<compile_context>
chip_gen: v6e
topology: v6e:2x2x1
jax: 0.10.0
libtpu: 0.0.40
codegen_flags: <defaults>
</compile_context>

<pallas_src>
import functools

import jax
import jax.numpy as jnp
from jax.experimental import pallas as pl
from jax.experimental.pallas import tpu as pltpu

_SUB = 16  # sublane multiple that is layout-safe for the bf16 h blocks


def _round_up(n, m):
    return ((n + m - 1) // m) * m


def _pick_tm(n, cap):
    """Batch-tile size: >= 2 tiles whenever possible (v7x megacore), capped."""
    if n <= _SUB:
        return _SUB
    return min(cap, _round_up((n + 1) // 2, _SUB))


# ---------------------------------------------------------------------------
# Kernel 1: conv1-as-matmul (f32 x cast to bf16 in-kernel, bf16 w1, f32 acc)
#           + per-tile BN partial statistics (lane-dense [sum | sumsq]).
# ---------------------------------------------------------------------------
def conv1_stats_kernel(x_ref, w1_ref, h_ref, stats_ref, *, n_rows, tm):
    # Cast under the DMA on the VPU -> single HBM pass over x.
    xb = x_ref[...].astype(jnp.bfloat16)                         # (TM, 4096)
    h = jnp.dot(xb, w1_ref[...], preferred_element_type=jnp.float32)

    # bf16 intermediate halves inter-pass HBM traffic; OOB rows of a partial
    # last block are dropped by Pallas on writeback.
    h_ref[...] = h.astype(jnp.bfloat16)

    # Mask garbage rows (beyond the real batch) out of the BN statistics.
    row = pl.program_id(0) * tm + jax.lax.broadcasted_iota(jnp.int32, (tm, 1), 0)
    hm = jnp.where(row < n_rows, h, 0.0)
    s = jnp.sum(hm, axis=0, keepdims=True)                       # (1, 128)
    sq = jnp.sum(hm * hm, axis=0, keepdims=True)                 # (1, 128)
    stats_ref[...] = jnp.concatenate([s, sq], axis=-1)[None]     # (1, 1, 256)


# ---------------------------------------------------------------------------
# Kernel 2: BN affine + LeakyReLU(0.1) + fused lane-dense head matmul + exp.
# ---------------------------------------------------------------------------
def bn_heads_kernel(h_ref, aff_ref, wh_ref, out_ref):
    # h_ref: (TM2, 128) bf16 -> f32 for the elementwise BN / LeakyReLU math.
    h = h_ref[...].astype(jnp.float32)
    scale = aff_ref[0:1, :]
    shift = aff_ref[1:2, :]
    bias = aff_ref[2:3, :]

    hn = h * scale + shift                                       # BatchNorm (folded)
    hn = jnp.where(hn >= 0.0, hn, 0.1 * hn)                      # LeakyReLU(0.1)

    out = jnp.dot(hn.astype(jnp.bfloat16), wh_ref[...],
                  preferred_element_type=jnp.float32) + bias

    # exp() only on the var lanes (44:48); other lanes pass through.
    col = jax.lax.broadcasted_iota(jnp.int32, out.shape, 1)
    out_ref[...] = jnp.where((col >= 44) & (col < 48), jnp.exp(out), out)


# ---------------------------------------------------------------------------
# Wrapper
# ---------------------------------------------------------------------------
def qhead_forward(x_nchw, params):
    N = x_nchw.shape[0]
    x_flat = x_nchw.reshape(N, -1)          # (N, 4096) f32, NCHW order (free)

    compiler_params = pltpu.CompilerParams(
        dimension_semantics=("parallel",),
        # TM=512 f32 x double-buffer (~16 MiB) + resident w1 needs more than
        # v5e's 16 MiB default scoped limit; 48 MiB is < v7x's 64 MiB physical.
        vmem_limit_bytes=48 << 20,
    )

    # ---- Pass 1: x @ W1 (bf16 MXU, f32 acc) + per-tile BN statistics. ----
    TM = _pick_tm(N, 512)
    n_tiles = pl.cdiv(N, TM)
    h, stats = pl.pallas_call(
        functools.partial(conv1_stats_kernel, n_rows=N, tm=TM),
        out_shape=(
            jax.ShapeDtypeStruct((N, 128), jnp.bfloat16),
            jax.ShapeDtypeStruct((n_tiles, 1, 256), jnp.float32),
        ),
        grid=(n_tiles,),
        in_specs=[
            pl.BlockSpec((TM, 4096), lambda i: (i, 0)),
            pl.BlockSpec((4096, 128), lambda i: (0, 0)),    # resident weight
        ],
        out_specs=(
            pl.BlockSpec((TM, 128), lambda i: (i, 0)),
            pl.BlockSpec((1, 1, 256), lambda i: (i, 0, 0)),
        ),
        compiler_params=compiler_params,
    )(x_flat, params["w1"])

    # Finalize cross-tile BatchNorm stats (tiny) and fold into scale/shift.
    total = jnp.sum(stats.reshape(n_tiles, 256), axis=0)    # (256,)
    mean = total[:128] / float(N)
    ex2 = total[128:] / float(N)
    var = jnp.maximum(ex2 - mean * mean, 0.0)                # biased var (BN default)
    scale = params["gamma"] * jax.lax.rsqrt(var + 1e-5)
    shift = params["beta"] - mean * scale
    affine = jnp.stack([scale, shift, params["head_bias"]], axis=0)  # (3, 128)

    # ---- Pass 2: normalize + LeakyReLU + fused heads (+ exp on var lanes). ----
    TM2 = _pick_tm(N, 4096)
    n_tiles2 = pl.cdiv(N, TM2)
    out = pl.pallas_call(
        bn_heads_kernel,
        out_shape=jax.ShapeDtypeStruct((N, 128), jnp.float32),
        grid=(n_tiles2,),
        in_specs=[
            pl.BlockSpec((TM2, 128), lambda i: (i, 0)),
            pl.BlockSpec((3, 128), lambda i: (0, 0)),        # packed tiny params
            pl.BlockSpec((128, 128), lambda i: (0, 0)),      # fused head weight
        ],
        out_specs=pl.BlockSpec((TM2, 128), lambda i: (i, 0)),
        compiler_params=compiler_params,
    )(h, affine, params["wh"])

    return out[:, 0:40], out[:, 40:44], out[:, 44:48]       # disc_logits, mu, var


# ---------------------------------------------------------------------------
# Parameters (same shapes/semantics as the PyTorch module, fused layout).
# ---------------------------------------------------------------------------
def init_params(key):
    ks = jax.random.split(key, 8)
    # conv1: (128, 256, 4, 4), no bias -> (4096, 128) matmul weight.
    w1 = (jax.random.normal(ks[0], (128, 256 * 4 * 4), jnp.float32) * 0.02).T
    # BatchNorm2d(128) affine params (non-trivial so the test exercises them).
    gamma = 1.0 + 0.1 * jax.random.normal(ks[1], (128,), jnp.float32)
    beta = 0.1 * jax.random.normal(ks[2], (128,), jnp.float32)
    # Head conv weights (1x1 convs == linear layers).
    wd = jax.random.normal(ks[3], (40, 128), jnp.float32) * 0.05
    wm = jax.random.normal(ks[4], (4, 128), jnp.float32) * 0.05
    wv = jax.random.normal(ks[5], (4, 128), jnp.float32) * 0.05
    bd = jax.random.normal(ks[6], (40,), jnp.float32) * 0.01
    bm = jax.random.normal(ks[7], (4,), jnp.float32) * 0.01
    bv = jnp.zeros((4,), jnp.float32)

    # Fuse the three heads into one lane-dense (128, 128) weight + (128,) bias.
    wh = jnp.zeros((128, 128), jnp.float32)
    wh = wh.at[:, 0:40].set(wd.T).at[:, 40:44].set(wm.T).at[:, 44:48].set(wv.T)
    head_bias = jnp.zeros((128,), jnp.float32)
    head_bias = head_bias.at[0:40].set(bd).at[40:44].set(bm).at[44:48].set(bv)

    return {
        "w1": w1.astype(jnp.bfloat16),      # (4096, 128) bf16 MXU operand
        "gamma": gamma,                     # (128,) f32
        "beta": beta,                       # (128,) f32
        "wh": wh.astype(jnp.bfloat16),      # (128, 128) bf16 fused head weight
        "head_bias": head_bias,             # (128,) f32 fused head bias
    }


def qhead_reference(x_nchw, params):
    """Pure-JAX f32 reference with identical semantics."""
    N = x_nchw.shape[0]
    xf = x_nchw.reshape(N, -1).astype(jnp.float32)
    h = xf @ params["w1"].astype(jnp.float32)
    mean = jnp.mean(h, axis=0)
    var = jnp.mean(jnp.square(h - mean), axis=0)
    hn = (h - mean) * jax.lax.rsqrt(var + 1e-5) * params["gamma"] + params["beta"]
    hn = jnp.where(hn >= 0.0, hn, 0.1 * hn)
    out = hn @ params["wh"].astype(jnp.float32) + params["head_bias"]
    return out[:, 0:40], out[:, 40:44], jnp.exp(out[:, 44:48])


if __name__ == "__main__":
    key = jax.random.PRNGKey(0)
    kx, kp = jax.random.split(key)
    # Input implied by the module: (N, 256, 4, 4) NCHW (4x4 VALID conv1).
    x = jax.random.normal(kx, (2, 256, 4, 4), jnp.float32)
    params = init_params(kp)

    disc_logits, mu, var = qhead_forward(x, params)
    jax.block_until_ready((disc_logits, mu, var))

    assert disc_logits.shape == (2, 40)
    assert mu.shape == (2, 4)
    assert var.shape == (2, 4)
    assert bool(jnp.all(jnp.isfinite(disc_logits)))
    assert bool(jnp.all(var > 0))

    # Loose-tolerance check vs f32 reference (bf16 matmul operands / bf16 h).
    rd, rm, rv = qhead_reference(x, params)
    assert bool(jnp.allclose(disc_logits, rd, rtol=1e-1, atol=1e-1))
    assert bool(jnp.allclose(mu, rm, rtol=1e-1, atol=1e-1))
    assert bool(jnp.allclose(var, rv, rtol=1e-1, atol=1e-1))

    print("KERNEL_OK")
</pallas_src>

<mosaic_0001>
module attributes {stable_mosaic.version = 11 : i64} {
  func.func @conv1_stats_kernel(%arg0: i32, %arg1: memref<16x4096xf32, #tpu.memory_space<vmem>>, %arg2: memref<4096x128xbf16, #tpu.memory_space<vmem>>, %arg3: memref<16x128xbf16, #tpu.memory_space<vmem>>, %arg4: memref<1x1x256xf32, #tpu.memory_space<vmem>>) attributes {dimension_semantics = [#tpu.dimension_semantics<parallel>], iteration_bounds = array<i64: 1>, scalar_prefetch = 0 : i64, scratch_operands = 0 : i64, tpu.core_type = #tpu.core_type<tc>, window_params = [{transform_indices = @transform_0, window_bounds = array<i64: 16, 4096>}, {pipeline_mode = #tpu.pipeline_mode<synchronous>, transform_indices = @transform_1, window_bounds = array<i64: 4096, 128>}, {transform_indices = @transform_2, window_bounds = array<i64: 16, 128>}, {transform_indices = @transform_3, window_bounds = array<i64: 1, 1, 256>}]} {
    %c0 = arith.constant 0 : index
    %c0_0 = arith.constant 0 : index
    %0 = vector.load %arg1[%c0, %c0_0] : memref<16x4096xf32, #tpu.memory_space<vmem>>, vector<16x4096xf32>
    %1 = arith.truncf %0 : vector<16x4096xf32> to vector<16x4096xbf16>
    %c0_1 = arith.constant 0 : index
    %c0_2 = arith.constant 0 : index
    %2 = vector.load %arg2[%c0_1, %c0_2] : memref<4096x128xbf16, #tpu.memory_space<vmem>>, vector<4096x128xbf16>
    %cst = arith.constant dense<0.000000e+00> : vector<16x128xf32>
    %3 = tpu.matmul %1, %2, %cst {dimension_numbers = #tpu.dot_dimension_numbers<[1], [0], [0], [1], [0, 0, 1, 1], [], []>} : vector<16x4096xbf16>, vector<4096x128xbf16>, vector<16x128xf32> -> vector<16x128xf32>
    %4 = arith.truncf %3 : vector<16x128xf32> to vector<16x128xbf16>
    %c0_3 = arith.constant 0 : index
    %c0_4 = arith.constant 0 : index
    %5 = vector.load %arg3[%c0_3, %c0_4] : memref<16x128xbf16, #tpu.memory_space<vmem>>, vector<16x128xbf16>
    tpu.vector_store %arg3[%c0_3, %c0_4], %4 {strides = array<i32>} : memref<16x128xbf16, #tpu.memory_space<vmem>>, vector<16x128xbf16>,
    %c16_i32 = arith.constant 16 : i32
    %6 = arith.muli %arg0, %c16_i32 : i32
    %7 = tpu.iota {dimensions = array<i32: 0>} : vector<16x1xi32>
    %8 = vector.broadcast %6 : i32 to vector<16x1xi32>
    %9 = arith.addi %8, %7 : vector<16x1xi32>
    %c2_i32 = arith.constant 2 : i32
    %10 = vector.broadcast %c2_i32 : i32 to vector<16x1xi32>
    %11 = arith.cmpi slt, %9, %10 : vector<16x1xi32>
    %cst_5 = arith.constant 0.000000e+00 : f32
    %12 = vector.shape_cast %11 : vector<16x1xi1> to vector<16x1xi1>
    %13 = vector.broadcast %12 : vector<16x1xi1> to vector<16x128xi1>
    %14 = vector.broadcast %cst_5 : f32 to vector<16x128xf32>
    %15 = arith.select %13, %3, %14 : vector<16x128xi1>, vector<16x128xf32>
    %cst_6 = arith.constant dense<0.000000e+00> : vector<128xf32>
    %16 = vector.multi_reduction <add>, %15, %cst_6 [0] : vector<16x128xf32> to vector<128xf32>
    %17 = vector.shape_cast %16 : vector<128xf32> to vector<1x128xf32>
    %18 = arith.mulf %15, %15 : vector<16x128xf32>
    %cst_7 = arith.constant dense<0.000000e+00> : vector<128xf32>
    %19 = vector.multi_reduction <add>, %18, %cst_7 [0] : vector<16x128xf32> to vector<128xf32>
    %20 = vector.shape_cast %19 : vector<128xf32> to vector<1x128xf32>
    %21 = tpu.concatenate %17, %20 in 1 : vector<1x128xf32>, vector<1x128xf32> -> vector<1x256xf32>
    %22 = vector.shape_cast %21 : vector<1x256xf32> to vector<1x1x256xf32>
    %c0_8 = arith.constant 0 : index
    %c0_9 = arith.constant 0 : index
    %c0_10 = arith.constant 0 : index
    %23 = vector.load %arg4[%c0_8, %c0_9, %c0_10] : memref<1x1x256xf32, #tpu.memory_space<vmem>>, vector<1x1x256xf32>
    tpu.vector_store %arg4[%c0_8, %c0_9, %c0_10], %22 {strides = array<i32>} : memref<1x1x256xf32, #tpu.memory_space<vmem>>, vector<1x1x256xf32>,
    return
  }
  func.func @transform_0(%arg0: i32) -> (i32, i32) {
    %c0_i32 = arith.constant 0 : i32
    %c0_i32_0 = arith.constant 0 : i32
    return %arg0, %c0_i32 : i32, i32
  }
  func.func @transform_1(%arg0: i32) -> (i32, i32) {
    %c0_i32 = arith.constant 0 : i32
    %c0_i32_0 = arith.constant 0 : i32
    %c0_i32_1 = arith.constant 0 : i32
    return %c0_i32, %c0_i32_0 : i32, i32
  }
  func.func @transform_2(%arg0: i32) -> (i32, i32) {
    %c0_i32 = arith.constant 0 : i32
    %c0_i32_0 = arith.constant 0 : i32
    return %arg0, %c0_i32 : i32, i32
  }
  func.func @transform_3(%arg0: i32) -> (i32, i32, i32) {
    %c0_i32 = arith.constant 0 : i32
    %c0_i32_0 = arith.constant 0 : i32
    %c0_i32_1 = arith.constant 0 : i32
    return %arg0, %c0_i32, %c0_i32_0 : i32, i32, i32
  }
}

</mosaic_0001>

<llo_original>
// kernel: tpu_custom_call.1
$region0: #{tpu_custom_call.1}
  #allocation0 [shape = 'u32[]', space=smem, size = 0x4, offset = 0x4, fixed_abs, tag = 'smem constant byte address 0x4 - core index']
  #allocation1 [shape = 'u32[144,128]{1,0:T(1,128)}', space=vmem, size = 0x12000, scoped, tag = 'internal scratch']
  %s0 = inlined_call_operand.hbm [shape: f32[2,4096], index: 0, kind: input, shape index: {}]
  %s1 = inlined_call_operand.hbm [shape: bf16[4096,128], index: 1, kind: input, shape index: {}]
  %s2 = inlined_call_operand.hbm [shape: bf16[2,128], index: 2, kind: output, shape index: {0}]
  %s3 = inlined_call_operand.hbm [shape: f32[1,1,256], index: 3, kind: output, shape index: {1}]
  %4 = xla_tuple %s2, %s3
  %s5 = sld [smem:[#allocation0]]
  $region34: #{tpu_custom_call.1} parent=0
    _
  %s7 = ssub.s32 1, %s5
  %s8 = scalar_select 0, %s7, %s5
  $region1: #{tpu_custom_call.1} parent=0
    #allocation2 [shape = 'u8[262144]{0}', space=vmem, size = 0x40000, scoped, tag = 'input window, operand 0, single buffered']
    #allocation3 [shape = 's32[1]{0}', space=sflag, size = 0x4, scoped, tag = 'scoped memory for tpu_custom_call.1']
    #allocation4 [shape = 's32[1]{0}', space=sflag, size = 0x4, scoped, tag = 'scoped memory for tpu_custom_call.1']
    #allocation5 [shape = 'u8[1048576]{0}', space=vmem, size = 0x100000, scoped, tag = 'input window, operand 1, single buffered']
    #allocation6 [shape = 's32[1]{0}', space=sflag, size = 0x4, scoped, tag = 'scoped memory for tpu_custom_call.1']
    #allocation7 [shape = 'u8[4096]{0}', space=vmem, size = 0x1000, scoped, tag = 'output window, operand 0, single buffered']
    #allocation8 [shape = 'u8[1024]{0}', space=vmem, size = 0x400, scoped, tag = 'output window, operand 1, single buffered']
    #allocation9 [shape = 's32[1]{0}', space=sflag, size = 0x4, scoped, tag = 'scoped memory for tpu_custom_call.1']
    %9 = vsyncpa [#allocation3], 0
    %10 = vsyncpa [#allocation6], 0
    %11 = vsyncpa [#allocation4], 0
    %12 = vsyncpa [#allocation9], 0
    // Predicated region
    $region2: #{tpu_custom_call.1} parent=1 // pred_check
      _
    $region3: #{tpu_custom_call.1} parent=1 // pred_check_branch
      %14 = sbr.rel (0) target = $region5
    $region4: #{tpu_custom_call.1} parent=1 // pred_region
      %s16 = ssub.s32 8192, 1024
      %17 = vsyncadd [#allocation3], %s16
      %s18 = sshll.u32 [#allocation2], 4
      %s19 = int_to_ptr.vmem [resolvable:$true] %s18
      %24 = dma.hbm_to_vmem [thread:$0]  %s0, 1024, %s19, [#allocation3], 1024, 1024, 64
    $region5: #{tpu_custom_call.1} parent=1 // pred_fallthru
      _
    // Predicated region
    $region6: #{tpu_custom_call.1} parent=1 // pred_check
      _
    $region7: #{tpu_custom_call.1} parent=1 // pred_check_branch
      %26 = sbr.rel (0) target = $region9
    $region8: #{tpu_custom_call.1} parent=1 // pred_region
      %s28 = ssub.s32 32768, 32768
      %29 = vsyncadd [#allocation6], %s28
      %s30 = sshll.u32 [#allocation5], 4
      %s31 = int_to_ptr.vmem [resolvable:$true] %s30
      %36 = dma.hbm_to_vmem [thread:$0]  %s1, 32768, %s31, [#allocation6], 64, 64, 4
    $region9: #{tpu_custom_call.1} parent=1 // pred_fallthru
      _
    // Predicated region
    $region10: #{tpu_custom_call.1} parent=1 // pred_check
      _
    $region11: #{tpu_custom_call.1} parent=1 // pred_check_branch
      %38 = sbr.rel (0) target = $region13
    $region12: #{tpu_custom_call.1} parent=1 // pred_region
      %39 = dma.done [#allocation3], 8192
    $region13: #{tpu_custom_call.1} parent=1 // pred_fallthru
      _
    // Predicated region
    $region14: #{tpu_custom_call.1} parent=1 // pred_check
      _
    $region15: #{tpu_custom_call.1} parent=1 // pred_check_branch
      %41 = sbr.rel (0) target = $region17
    $region16: #{tpu_custom_call.1} parent=1 // pred_region
      %42 = dma.done [#allocation6], 32768
    $region17: #{tpu_custom_call.1} parent=1 // pred_fallthru
      _
    %v44 = vld [vmem:[#allocation2] sm:$0xff]
    %v45 = vld [vmem:[#allocation2 + $0x8] sm:$0xff]
    %v46 = vld [vmem:[#allocation2 + $0x10] sm:$0xff]
    %v47 = vld [vmem:[#allocation2 + $0x18] sm:$0xff]
    %v48 = vld [vmem:[#allocation2 + $0x20] sm:$0xff]
    %v49 = vld [vmem:[#allocation2 + $0x28] sm:$0xff]
    %v50 = vld [vmem:[#allocation2 + $0x30] sm:$0xff]
    %v51 = vld [vmem:[#allocation2 + $0x38] sm:$0xff]
    %v52 = vld [vmem:[#allocation2 + $0x40] sm:$0xff]
    %v53 = vld [vmem:[#allocation2 + $0x48] sm:$0xff]
    %v54 = vld [vmem:[#allocation2 + $0x50] sm:$0xff]
    %v55 = vld [vmem:[#allocation2 + $0x58] sm:$0xff]
    %v56 = vld [vmem:[#allocation2 + $0x60] sm:$0xff]
    %v57 = vld [vmem:[#allocation2 + $0x68] sm:$0xff]
    %v58 = vld [vmem:[#allocation2 + $0x70] sm:$0xff]
    %v59 = vld [vmem:[#allocation2 + $0x78] sm:$0xff]
    %v60 = vld [vmem:[#allocation2 + $0x80] sm:$0xff]
    %v61 = vld [vmem:[#allocation2 + $0x88] sm:$0xff]
    %v62 = vld [vmem:[#allocation2 + $0x90] sm:$0xff]
    %v63 = vld [vmem:[#allocation2 + $0x98] sm:$0xff]
    %v64 = vld [vmem:[#allocation2 + $0xa0] sm:$0xff]
    %v65 = vld [vmem:[#allocation2 + $0xa8] sm:$0xff]
    %v66 = vld [vmem:[#allocation2 + $0xb0] sm:$0xff]
    %v67 = vld [vmem:[#allocation2 + $0xb8] sm:$0xff]
    %v68 = vld [vmem:[#allocation2 + $0xc0] sm:$0xff]
    %v69 = vld [vmem:[#allocation2 + $0xc8] sm:$0xff]
    %v70 = vld [vmem:[#allocation2 + $0xd0] sm:$0xff]
    %v71 = vld [vmem:[#allocation2 + $0xd8] sm:$0xff]
    %v72 = vld [vmem:[#allocation2 + $0xe0] sm:$0xff]
    %v73 = vld [vmem:[#allocation2 + $0xe8] sm:$0xff]
    %v74 = vld [vmem:[#allocation2 + $0xf0] sm:$0xff]
    %v75 = vld [vmem:[#allocation2 + $0xf8] sm:$0xff]
    %v76 = vld [vmem:[#allocation2 + $0x100] sm:$0xff]
    %v77 = vld [vmem:[#allocation2 + $0x108] sm:$0xff]
    %v78 = vld [vmem:[#allocation2 + $0x110] sm:$0xff]
    %v79 = vld [vmem:[#allocation2 + $0x118] sm:$0xff]
    %v80 = vld [vmem:[#allocation2 + $0x120] sm:$0xff]
    %v81 = vld [vmem:[#allocation2 + $0x128] sm:$0xff]
    %v82 = vld [vmem:[#allocation2 + $0x130] sm:$0xff]
    %v83 = vld [vmem:[#allocation2 + $0x138] sm:$0xff]
    %v84 = vld [vmem:[#allocation2 + $0x140] sm:$0xff]
    %v85 = vld [vmem:[#allocation2 + $0x148] sm:$0xff]
    %v86 = vld [vmem:[#allocation2 + $0x150] sm:$0xff]
    %v87 = vld [vmem:[#allocation2 + $0x158] sm:$0xff]
    %v88 = vld [vmem:[#allocation2 + $0x160] sm:$0xff]
    %v89 = vld [vmem:[#allocation2 + $0x168] sm:$0xff]
    %v90 = vld [vmem:[#allocation2 + $0x170] sm:$0xff]
    %v91 = vld [vmem:[#allocation2 + $0x178] sm:$0xff]
    %v92 = vld [vmem:[#allocation2 + $0x180] sm:$0xff]
    %v93 = vld [vmem:[#allocation2 + $0x188] sm:$0xff]
    %v94 = vld [vmem:[#allocation2 + $0x190] sm:$0xff]
    %v95 = vld [vmem:[#allocation2 + $0x198] sm:$0xff]
    %v96 = vld [vmem:[#allocation2 + $0x1a0] sm:$0xff]
    %v97 = vld [vmem:[#allocation2 + $0x1a8] sm:$0xff]
    %v98 = vld [vmem:[#allocation2 + $0x1b0] sm:$0xff]
    %v99 = vld [vmem:[#allocation2 + $0x1b8] sm:$0xff]
    %v100 = vld [vmem:[#allocation2 + $0x1c0] sm:$0xff]
    %v101 = vld [vmem:[#allocation2 + $0x1c8] sm:$0xff]
    %v102 = vld [vmem:[#allocation2 + $0x1d0] sm:$0xff]
    %v103 = vld [vmem:[#allocation2 + $0x1d8] sm:$0xff]
    %v104 = vld [vmem:[#allocation2 + $0x1e0] sm:$0xff]
    %v105 = vld [vmem:[#allocation2 + $0x1e8] sm:$0xff]
    %v106 = vld [vmem:[#allocation2 + $0x1f0] sm:$0xff]
    %v107 = vld [vmem:[#allocation2 + $0x1f8] sm:$0xff]
    %v172 = vcombine.low %v44, %v52
    %v173 = vcombine.high %v44, %v52
    %v174 = vcombine.low %v60, %v68
    %v175 = vcombine.high %v60, %v68
    %v177 = vunpack.c.l.s4 1983009808
    %v178 = vunpack.c.0.s8 %v177
    %v179 = vlaneseq
    %v180 = vshrl.u32 %v179, 7
    %v181 = vsub.s32 %v178, %v180
    %v182 = vrot.slane %v172, %v181
    %v184 = vunpack.c.l.s4 1983009808
    %v185 = vunpack.c.0.s8 %v184
    %v186 = vlaneseq
    %v187 = vshrl.u32 %v186, 7
    %v188 = vsub.s32 %v185, %v187
    %v189 = vrot.slane %v173, %v188
    %v191 = vunpack.c.l.s4 1983009808
    %v192 = vunpack.c.0.s8 %v191
    %v193 = vlaneseq
    %v194 = vshrl.u32 %v193, 7
    %v195 = vsub.s32 %v192, %v194
    %v196 = vrot.slane %v174, %v195
    %v198 = vunpack.c.l.s4 1983009808
    %v199 = vunpack.c.0.s8 %v198
    %v200 = vlaneseq
    %v201 = vshrl.u32 %v200, 7
    %v202 = vsub.s32 %v199, %v201
    %v203 = vrot.slane %v175, %v202
    %v204 = vcombine.low %v182, %v196
    %v205 = vcombine.high %v182, %v196
    %v206 = vcombine.low %v189, %v203
    %v207 = vcombine.high %v189, %v203
    %v208 = vcombine.low %v45, %v53
    %v209 = vcombine.high %v45, %v53
    %v210 = vcombine.low %v61, %v69
    %v211 = vcombine.high %v61, %v69
    %v213 = vunpack.c.l.s4 1983009808
    %v214 = vunpack.c.0.s8 %v213
    %v215 = vlaneseq
    %v216 = vshrl.u32 %v215, 7
    %v217 = vsub.s32 %v214, %v216
    %v218 = vrot.slane %v208, %v217
    %v220 = vunpack.c.l.s4 1983009808
    %v221 = vunpack.c.0.s8 %v220
    %v222 = vlaneseq
    %v223 = vshrl.u32 %v222, 7
    %v224 = vsub.s32 %v221, %v223
    %v225 = vrot.slane %v209, %v224
    %v227 = vunpack.c.l.s4 1983009808
    %v228 = vunpack.c.0.s8 %v227
    %v229 = vlaneseq
    %v230 = vshrl.u32 %v229, 7
    %v231 = vsub.s32 %v228, %v230
    %v232 = vrot.slane %v210, %v231
    %v234 = vunpack.c.l.s4 1983009808
    %v235 = vunpack.c.0.s8 %v234
    %v236 = vlaneseq
    %v237 = vshrl.u32 %v236, 7
    %v238 = vsub.s32 %v235, %v237
    %v239 = vrot.slane %v211, %v238
    %v240 = vcombine.low %v218, %v232
    %v241 = vcombine.high %v218, %v232
    %v242 = vcombine.low %v225, %v239
    %v243 = vcombine.high %v225, %v239
    %v244 = vcombine.low %v46, %v54
    %v245 = vcombine.high %v46, %v54
    %v246 = vcombine.low %v62, %v70
    %v247 = vcombine.high %v62, %v70
    %v249 = vunpack.c.l.s4 1983009808
    %v250 = vunpack.c.0.s8 %v249
    %v251 = vlaneseq
    %v252 = vshrl.u32 %v251, 7
    %v253 = vsub.s32 %v250, %v252
    %v254 = vrot.slane %v244, %v253
    %v256 = vunpack.c.l.s4 1983009808
    %v257 = vunpack.c.0.s8 %v256
    %v258 = vlaneseq
    %v259 = vshrl.u32 %v258, 7
    %v260 = vsub.s32 %v257, %v259
    %v261 = vrot.slane %v245, %v260
    %v263 = vunpack.c.l.s4 1983009808
    %v264 = vunpack.c.0.s8 %v263
    %v265 = vlaneseq
    %v266 = vshrl.u32 %v265, 7
    %v267 = vsub.s32 %v264, %v266
    %v268 = vrot.slane %v246, %v267
    %v270 = vunpack.c.l.s4 1983009808
    %v271 = vunpack.c.0.s8 %v270
    %v272 = vlaneseq
    %v273 = vshrl.u32 %v272, 7
    %v274 = vsub.s32 %v271, %v273
    %v275 = vrot.slane %v247, %v274
    %v276 = vcombine.low %v254, %v268
    %v277 = vcombine.high %v254, %v268
    %v278 = vcombine.low %v261, %v275
    %v279 = vcombine.high %v261, %v275
    %v280 = vcombine.low %v47, %v55
    %v281 = vcombine.high %v47, %v55
    %v282 = vcombine.low %v63, %v71
    %v283 = vcombine.high %v63, %v71
    %v285 = vunpack.c.l.s4 1983009808
    %v286 = vunpack.c.0.s8 %v285
    %v287 = vlaneseq
    %v288 = vshrl.u32 %v287, 7
    %v289 = vsub.s32 %v286, %v288
    %v290 = vrot.slane %v280, %v289
    %v292 = vunpack.c.l.s4 1983009808
    %v293 = vunpack.c.0.s8 %v292
    %v294 = vlaneseq
    %v295 = vshrl.u32 %v294, 7
    %v296 = vsub.s32 %v293, %v295
    %v297 = vrot.slane %v281, %v296
    %v299 = vunpack.c.l.s4 1983009808
    %v300 = vunpack.c.0.s8 %v299
    %v301 = vlaneseq
    %v302 = vshrl.u32 %v301, 7
    %v303 = vsub.s32 %v300, %v302
    %v304 = vrot.slane %v282, %v303
    %v306 = vunpack.c.l.s4 1983009808
    %v307 = vunpack.c.0.s8 %v306
    %v308 = vlaneseq
    %v309 = vshrl.u32 %v308, 7
    %v310 = vsub.s32 %v307, %v309
    %v311 = vrot.slane %v283, %v310
    %v312 = vcombine.low %v290, %v304
    %v313 = vcombine.high %v290, %v304
    %v314 = vcombine.low %v297, %v311
    %v315 = vcombine.high %v297, %v311
    %v316 = vcombine.low %v48, %v56
    %v317 = vcombine.high %v48, %v56
    %v318 = vcombine.low %v64, %v72
    %v319 = vcombine.high %v64, %v72
    %v321 = vunpack.c.l.s4 1983009808
    %v322 = vunpack.c.0.s8 %v321
    %v323 = vlaneseq
    %v324 = vshrl.u32 %v323, 7
    %v325 = vsub.s32 %v322, %v324
    %v326 = vrot.slane %v316, %v325
    %v328 = vunpack.c.l.s4 1983009808
    %v329 = vunpack.c.0.s8 %v328
    %v330 = vlaneseq
    %v331 = vshrl.u32 %v330, 7
    %v332 = vsub.s32 %v329, %v331
    %v333 = vrot.slane %v317, %v332
    %v335 = vunpack.c.l.s4 1983009808
    %v336 = vunpack.c.0.s8 %v335
    %v337 = vlaneseq
    %v338 = vshrl.u32 %v337, 7
    %v339 = vsub.s32 %v336, %v338
    %v340 = vrot.slane %v318, %v339
    %v342 = vunpack.c.l.s4 1983009808
    %v343 = vunpack.c.0.s8 %v342
    %v344 = vlaneseq
    %v345 = vshrl.u32 %v344, 7
    %v346 = vsub.s32 %v343, %v345
    %v347 = vrot.slane %v319, %v346
    %v348 = vcombine.low %v326, %v340
    %v349 = vcombine.high %v326, %v340
    %v350 = vcombine.low %v333, %v347
    %v351 = vcombine.high %v333, %v347
    %v352 = vcombine.low %v49, %v57
    %v353 = vcombine.high %v49, %v57
    %v354 = vcombine.low %v65, %v73
    %v355 = vcombine.high %v65, %v73
    %v357 = vunpack.c.l.s4 1983009808
    %v358 = vunpack.c.0.s8 %v357
    %v359 = vlaneseq
    %v360 = vshrl.u32 %v359, 7
    %v361 = vsub.s32 %v358, %v360
    %v362 = vrot.slane %v352, %v361
    %v364 = vunpack.c.l.s4 1983009808
    %v365 = vunpack.c.0.s8 %v364
    %v366 = vlaneseq
    %v367 = vshrl.u32 %v366, 7
    %v368 = vsub.s32 %v365, %v367
    %v369 = vrot.slane %v353, %v368
    %v371 = vunpack.c.l.s4 1983009808
    %v372 = vunpack.c.0.s8 %v371
    %v373 = vlaneseq
    %v374 = vshrl.u32 %v373, 7
    %v375 = vsub.s32 %v372, %v374
    %v376 = vrot.slane %v354, %v375
    %v378 = vunpack.c.l.s4 1983009808
    %v379 = vunpack.c.0.s8 %v378
    %v380 = vlaneseq
    %v381 = vshrl.u32 %v380, 7
    %v382 = vsub.s32 %v379, %v381
    %v383 = vrot.slane %v355, %v382
    %v384 = vcombine.low %v362, %v376
    %v385 = vcombine.high %v362, %v376
    %v386 = vcombine.low %v369, %v383
    %v387 = vcombine.high %v369, %v383
    %v388 = vcombine.low %v50, %v58
    %v389 = vcombine.high %v50, %v58
    %v390 = vcombine.low %v66, %v74
    %v391 = vcombine.high %v66, %v74
    %v393 = vunpack.c.l.s4 1983009808
    %v394 = vunpack.c.0.s8 %v393
    %v395 = vlaneseq
    %v396 = vshrl.u32 %v395, 7
    %v397 = vsub.s32 %v394, %v396
    %v398 = vrot.slane %v388, %v397
    %v400 = vunpack.c.l.s4 1983009808
    %v401 = vunpack.c.0.s8 %v400
    %v402 = vlaneseq
    %v403 = vshrl.u32 %v402, 7
    %v404 = vsub.s32 %v401, %v403
    %v405 = vrot.slane %v389, %v404
    %v407 = vunpack.c.l.s4 1983009808
    %v408 = vunpack.c.0.s8 %v407
    %v409 = vlaneseq
    %v410 = vshrl.u32 %v409, 7
    %v411 = vsub.s32 %v408, %v410
    %v412 = vrot.slane %v390, %v411
    %v414 = vunpack.c.l.s4 1983009808
    %v415 = vunpack.c.0.s8 %v414
    %v416 = vlaneseq
    %v417 = vshrl.u32 %v416, 7
    %v418 = vsub.s32 %v415, %v417
    %v419 = vrot.slane %v391, %v418
    %v420 = vcombine.low %v398, %v412
    %v421 = vcombine.high %v398, %v412
    %v422 = vcombine.low %v405, %v419
    %v423 = vcombine.high %v405, %v419
    %v424 = vcombine.low %v51, %v59
    %v425 = vcombine.high %v51, %v59
    %v426 = vcombine.low %v67, %v75
    %v427 = vcombine.high %v67, %v75
    %v429 = vunpack.c.l.s4 1983009808
    %v430 = vunpack.c.0.s8 %v429
    %v431 = vlaneseq
    %v432 = vshrl.u32 %v431, 7
    %v433 = vsub.s32 %v430, %v432
    %v434 = vrot.slane %v424, %v433
    %v436 = vunpack.c.l.s4 1983009808
    %v437 = vunpack.c.0.s8 %v436
    %v438 = vlaneseq
    %v439 = vshrl.u32 %v438, 7
    %v440 = vsub.s32 %v437, %v439
    %v441 = vrot.slane %v425, %v440
    %v443 = vunpack.c.l.s4 1983009808
    %v444 = vunpack.c.0.s8 %v443
    %v445 = vlaneseq
    %v446 = vshrl.u32 %v445, 7
    %v447 = vsub.s32 %v444, %v446
    %v448 = vrot.slane %v426, %v447
    %v450 = vunpack.c.l.s4 1983009808
    %v451 = vunpack.c.0.s8 %v450
    %v452 = vlaneseq
    %v453 = vshrl.u32 %v452, 7
    %v454 = vsub.s32 %v451, %v453
    %v455 = vrot.slane %v427, %v454
    %v456 = vcombine.low %v434, %v448
    %v457 = vcombine.high %v434, %v448
    %v458 = vcombine.low %v441, %v455
    %v459 = vcombine.high %v441, %v455
    %v460 = vcombine.low %v76, %v84
    %v461 = vcombine.high %v76, %v84
    %v462 = vcombine.low %v92, %v100
    %v463 = vcombine.high %v92, %v100
    %v465 = vunpack.c.l.s4 1983009808
    %v466 = vunpack.c.0.s8 %v465
    %v467 = vlaneseq
    %v468 = vshrl.u32 %v467, 7
    %v469 = vsub.s32 %v466, %v468
    %v470 = vrot.slane %v460, %v469
    %v472 = vunpack.c.l.s4 1983009808
    %v473 = vunpack.c.0.s8 %v472
    %v474 = vlaneseq
    %v475 = vshrl.u32 %v474, 7
    %v476 = vsub.s32 %v473, %v475
    %v477 = vrot.slane %v461, %v476
    %v479 = vunpack.c.l.s4 1983009808
    %v480 = vunpack.c.0.s8 %v479
    %v481 = vlaneseq
    %v482 = vshrl.u32 %v481, 7
    %v483 = vsub.s32 %v480, %v482
    %v484 = vrot.slane %v462, %v483
    %v486 = vunpack.c.l.s4 1983009808
    %v487 = vunpack.c.0.s8 %v486
    %v488 = vlaneseq
    %v489 = vshrl.u32 %v488, 7
    %v490 = vsub.s32 %v487, %v489
    %v491 = vrot.slane %v463, %v490
    %v492 = vcombine.low %v470, %v484
    %v493 = vcombine.high %v470, %v484
    %v494 = vcombine.low %v477, %v491
    %v495 = vcombine.high %v477, %v491
    %v496 = vcombine.low %v77, %v85
    %v497 = vcombine.high %v77, %v85
    %v498 = vcombine.low %v93, %v101
    %v499 = vcombine.high %v93, %v101
    %v501 = vunpack.c.l.s4 1983009808
    %v502 = vunpack.c.0.s8 %v501
    %v503 = vlaneseq
    %v504 = vshrl.u32 %v503, 7
    %v505 = vsub.s32 %v502, %v504
    %v506 = vrot.slane %v496, %v505
    %v508 = vunpack.c.l.s4 1983009808
    %v509 = vunpack.c.0.s8 %v508
    %v510 = vlaneseq
    %v511 = vshrl.u32 %v510, 7
    %v512 = vsub.s32 %v509, %v511
    %v513 = vrot.slane %v497, %v512
    %v515 = vunpack.c.l.s4 1983009808
    %v516 = vunpack.c.0.s8 %v515
    %v517 = vlaneseq
    %v518 = vshrl.u32 %v517, 7
    %v519 = vsub.s32 %v516, %v518
    %v520 = vrot.slane %v498, %v519
    %v522 = vunpack.c.l.s4 1983009808
    %v523 = vunpack.c.0.s8 %v522
    %v524 = vlaneseq
    %v525 = vshrl.u32 %v524, 7
    %v526 = vsub.s32 %v523, %v525
    %v527 = vrot.slane %v499, %v526
    %v528 = vcombine.low %v506, %v520
    %v529 = vcombine.high %v506, %v520
    %v530 = vcombine.low %v513, %v527
    %v531 = vcombine.high %v513, %v527
    %v532 = vcombine.low %v78, %v86
    %v533 = vcombine.high %v78, %v86
    %v534 = vcombine.low %v94, %v102
    %v535 = vcombine.high %v94, %v102
    %v537 = vunpack.c.l.s4 1983009808
    %v538 = vunpack.c.0.s8 %v537
    %v539 = vlaneseq
    %v540 = vshrl.u32 %v539, 7
    %v541 = vsub.s32 %v538, %v540
    %v542 = vrot.slane %v532, %v541
    %v544 = vunpack.c.l.s4 1983009808
    %v545 = vunpack.c.0.s8 %v544
    %v546 = vlaneseq
    %v547 = vshrl.u32 %v546, 7
    %v548 = vsub.s32 %v545, %v547
    %v549 = vrot.slane %v533, %v548
    %v551 = vunpack.c.l.s4 1983009808
    %v552 = vunpack.c.0.s8 %v551
    %v553 = vlaneseq
    %v554 = vshrl.u32 %v553, 7
    %v555 = vsub.s32 %v552, %v554
    %v556 = vrot.slane %v534, %v555
    %v558 = vunpack.c.l.s4 1983009808
    %v559 = vunpack.c.0.s8 %v558
    %v560 = vlaneseq
    %v561 = vshrl.u32 %v560, 7
    %v562 = vsub.s32 %v559, %v561
    %v563 = vrot.slane %v535, %v562
    %v564 = vcombine.low %v542, %v556
    %v565 = vcombine.high %v542, %v556
    %v566 = vcombine.low %v549, %v563
    %v567 = vcombine.high %v549, %v563
    %v568 = vcombine.low %v79, %v87
    %v569 = vcombine.high %v79, %v87
    %v570 = vcombine.low %v95, %v103
    %v571 = vcombine.high %v95, %v103
    %v573 = vunpack.c.l.s4 1983009808
    %v574 = vunpack.c.0.s8 %v573
    %v575 = vlaneseq
    %v576 = vshrl.u32 %v575, 7
    %v577 = vsub.s32 %v574, %v576
    %v578 = vrot.slane %v568, %v577
    %v580 = vunpack.c.l.s4 1983009808
    %v581 = vunpack.c.0.s8 %v580
    %v582 = vlaneseq
    %v583 = vshrl.u32 %v582, 7
    %v584 = vsub.s32 %v581, %v583
    %v585 = vrot.slane %v569, %v584
    %v587 = vunpack.c.l.s4 1983009808
    %v588 = vunpack.c.0.s8 %v587
    %v589 = vlaneseq
    %v590 = vshrl.u32 %v589, 7
    %v591 = vsub.s32 %v588, %v590
    %v592 = vrot.slane %v570, %v591
    %v594 = vunpack.c.l.s4 1983009808
    %v595 = vunpack.c.0.s8 %v594
    %v596 = vlaneseq
    %v597 = vshrl.u32 %v596, 7
    %v598 = vsub.s32 %v595, %v597
    %v599 = vrot.slane %v571, %v598
    %v600 = vcombine.low %v578, %v592
    %v601 = vcombine.high %v578, %v592
    %v602 = vcombine.low %v585, %v599
    %v603 = vcombine.high %v585, %v599
    %v604 = vcombine.low %v80, %v88
    %v605 = vcombine.high %v80, %v88
    %v606 = vcombine.low %v96, %v104
    %v607 = vcombine.high %v96, %v104
    %v609 = vunpack.c.l.s4 1983009808
    %v610 = vunpack.c.0.s8 %v609
    %v611 = vlaneseq
    %v612 = vshrl.u32 %v611, 7
    %v613 = vsub.s32 %v610, %v612
    %v614 = vrot.slane %v604, %v613
    %v616 = vunpack.c.l.s4 1983009808
    %v617 = vunpack.c.0.s8 %v616
    %v618 = vlaneseq
    %v619 = vshrl.u32 %v618, 7
    %v620 = vsub.s32 %v617, %v619
    %v621 = vrot.slane %v605, %v620
    %v623 = vunpack.c.l.s4 1983009808
    %v624 = vunpack.c.0.s8 %v623
    %v625 = vlaneseq
    %v626 = vshrl.u32 %v625, 7
    %v627 = vsub.s32 %v624, %v626
    %v628 = vrot.slane %v606, %v627
    %v630 = vunpack.c.l.s4 1983009808
    %v631 = vunpack.c.0.s8 %v630
    %v632 = vlaneseq
    %v633 = vshrl.u32 %v632, 7
    %v634 = vsub.s32 %v631, %v633
    %v635 = vrot.slane %v607, %v634
    %v636 = vcombine.low %v614, %v628
    %v637 = vcombine.high %v614, %v628
    %v638 = vcombine.low %v621, %v635
    %v639 = vcombine.high %v621, %v635
    %v640 = vcombine.low %v81, %v89
    %v641 = vcombine.high %v81, %v89
    %v642 = vcombine.low %v97, %v105
    %v643 = vcombine.high %v97, %v105
    %v645 = vunpack.c.l.s4 1983009808
    %v646 = vunpack.c.0.s8 %v645
    %v647 = vlaneseq
    %v648 = vshrl.u32 %v647, 7
    %v649 = vsub.s32 %v646, %v648
    %v650 = vrot.slane %v640, %v649
    %v652 = vunpack.c.l.s4 1983009808
    %v653 = vunpack.c.0.s8 %v652
    %v654 = vlaneseq
    %v655 = vshrl.u32 %v654, 7
    %v656 = vsub.s32 %v653, %v655
    %v657 = vrot.slane %v641, %v656
    %v659 = vunpack.c.l.s4 1983009808
    %v660 = vunpack.c.0.s8 %v659
    %v661 = vlaneseq
    %v662 = vshrl.u32 %v661, 7
    %v663 = vsub.s32 %v660, %v662
    %v664 = vrot.slane %v642, %v663
    %v666 = vunpack.c.l.s4 1983009808
    %v667 = vunpack.c.0.s8 %v666
    %v668 = vlaneseq
    %v669 = vshrl.u32 %v668, 7
    %v670 = vsub.s32 %v667, %v669
    %v671 = vrot.slane %v643, %v670
    %v672 = vcombine.low %v650, %v664
    %v673 = vcombine.high %v650, %v664
    %v674 = vcombine.low %v657, %v671
    %v675 = vcombine.high %v657, %v671
    %v676 = vcombine.low %v82, %v90
    %v677 = vcombine.high %v82, %v90
    %v678 = vcombine.low %v98, %v106
    %v679 = vcombine.high %v98, %v106
    %v681 = vunpack.c.l.s4 1983009808
    %v682 = vunpack.c.0.s8 %v681
    %v683 = vlaneseq
    %v684 = vshrl.u32 %v683, 7
    %v685 = vsub.s32 %v682, %v684
    %v686 = vrot.slane %v676, %v685
    %v688 = vunpack.c.l.s4 1983009808
    %v689 = vunpack.c.0.s8 %v688
    %v690 = vlaneseq
    %v691 = vshrl.u32 %v690, 7
    %v692 = vsub.s32 %v689, %v691
    %v693 = vrot.slane %v677, %v692
    %v695 = vunpack.c.l.s4 1983009808
    %v696 = vunpack.c.0.s8 %v695
    %v697 = vlaneseq
    %v698 = vshrl.u32 %v697, 7
    %v699 = vsub.s32 %v696, %v698
    %v700 = vrot.slane %v678, %v699
    %v702 = vunpack.c.l.s4 1983009808
    %v703 = vunpack.c.0.s8 %v702
    %v704 = vlaneseq
    %v705 = vshrl.u32 %v704, 7
    %v706 = vsub.s32 %v703, %v705
    %v707 = vrot.slane %v679, %v706
    %v708 = vcombine.low %v686, %v700
    %v709 = vcombine.high %v686, %v700
    %v710 = vcombine.low %v693, %v707
    %v711 = vcombine.high %v693, %v707
    %v712 = vcombine.low %v83, %v91
    %v713 = vcombine.high %v83, %v91
    %v714 = vcombine.low %v99, %v107
    %v715 = vcombine.high %v99, %v107
    %v717 = vunpack.c.l.s4 1983009808
    %v718 = vunpack.c.0.s8 %v717
    %v719 = vlaneseq
    %v720 = vshrl.u32 %v719, 7
    %v721 = vsub.s32 %v718, %v720
    %v722 = vrot.slane %v712, %v721
    %v724 = vunpack.c.l.s4 1983009808
    %v725 = vunpack.c.0.s8 %v724
    %v726 = vlaneseq
    %v727 = vshrl.u32 %v726, 7
    %v728 = vsub.s32 %v725, %v727
    %v729 = vrot.slane %v713, %v728
    %v731 = vunpack.c.l.s4 1983009808
    %v732 = vunpack.c.0.s8 %v731
    %v733 = vlaneseq
    %v734 = vshrl.u32 %v733, 7
    %v735 = vsub.s32 %v732, %v734
    %v736 = vrot.slane %v714, %v735
    %v738 = vunpack.c.l.s4 1983009808
    %v739 = vunpack.c.0.s8 %v738
    %v740 = vlaneseq
    %v741 = vshrl.u32 %v740, 7
    %v742 = vsub.s32 %v739, %v741
    %v743 = vrot.slane %v715, %v742
    %v744 = vcombine.low %v722, %v736
    %v745 = vcombine.high %v722, %v736
    %v746 = vcombine.low %v729, %v743
    %v747 = vcombine.high %v729, %v743
    %v812 = vpack.c.bf16 %v492, %v204
    %v813 = vpack.c.bf16 %v493, %v205
    %v814 = vpack.c.bf16 %v494, %v206
    %v815 = vpack.c.bf16 %v495, %v207
    %v816 = vpack.c.bf16 %v528, %v240
    %v817 = vpack.c.bf16 %v529, %v241
    %v818 = vpack.c.bf16 %v530, %v242
    %v819 = vpack.c.bf16 %v531, %v243
    %v820 = vpack.c.bf16 %v564, %v276
    %v821 = vpack.c.bf16 %v565, %v277
    %v822 = vpack.c.bf16 %v566, %v278
    %v823 = vpack.c.bf16 %v567, %v279
    %v824 = vpack.c.bf16 %v600, %v312
    %v825 = vpack.c.bf16 %v601, %v313
    %v826 = vpack.c.bf16 %v602, %v314
    %v827 = vpack.c.bf16 %v603, %v315
    %v828 = vpack.c.bf16 %v636, %v348
    %v829 = vpack.c.bf16 %v637, %v349
    %v830 = vpack.c.bf16 %v638, %v350
    %v831 = vpack.c.bf16 %v639, %v351
    %v832 = vpack.c.bf16 %v672, %v384
    %v833 = vpack.c.bf16 %v673, %v385
    %v834 = vpack.c.bf16 %v674, %v386
    %v835 = vpack.c.bf16 %v675, %v387
    %v836 = vpack.c.bf16 %v708, %v420
    %v837 = vpack.c.bf16 %v709, %v421
    %v838 = vpack.c.bf16 %v710, %v422
    %v839 = vpack.c.bf16 %v711, %v423
    %v840 = vpack.c.bf16 %v744, %v456
    %v841 = vpack.c.bf16 %v745, %v457
    %v842 = vpack.c.bf16 %v746, %v458
    %v843 = vpack.c.bf16 %v747, %v459
    %v844 = vld [vmem:[#allocation5] sm:$0xf]
    %v845 = vld [vmem:[#allocation5 + $0x4] sm:$0xf]
    %v846 = vld [vmem:[#allocation5 + $0x8] sm:$0xf]
    %v847 = vld [vmem:[#allocation5 + $0xc] sm:$0xf]
    %v848 = vld [vmem:[#allocation5 + $0x10] sm:$0xf]
    %v849 = vld [vmem:[#allocation5 + $0x14] sm:$0xf]
    %v850 = vld [vmem:[#allocation5 + $0x18] sm:$0xf]
    %v851 = vld [vmem:[#allocation5 + $0x1c] sm:$0xf]
    %v852 = vld [vmem:[#allocation5 + $0x20] sm:$0xf]
    %v853 = vld [vmem:[#allocation5 + $0x24] sm:$0xf]
    %v854 = vld [vmem:[#allocation5 + $0x28] sm:$0xf]
    %v855 = vld [vmem:[#allocation5 + $0x2c] sm:$0xf]
    %v856 = vld [vmem:[#allocation5 + $0x30] sm:$0xf]
    %v857 = vld [vmem:[#allocation5 + $0x34] sm:$0xf]
    %v858 = vld [vmem:[#allocation5 + $0x38] sm:$0xf]
    %v859 = vld [vmem:[#allocation5 + $0x3c] sm:$0xf]
    %v860 = vld [vmem:[#allocation5 + $0x40] sm:$0xf]
    %v861 = vld [vmem:[#allocation5 + $0x44] sm:$0xf]
    %v862 = vld [vmem:[#allocation5 + $0x48] sm:$0xf]
    %v863 = vld [vmem:[#allocation5 + $0x4c] sm:$0xf]
    %v864 = vld [vmem:[#allocation5 + $0x50] sm:$0xf]
    %v865 = vld [vmem:[#allocation5 + $0x54] sm:$0xf]
    %v866 = vld [vmem:[#allocation5 + $0x58] sm:$0xf]
    %v867 = vld [vmem:[#allocation5 + $0x5c] sm:$0xf]
    %v868 = vld [vmem:[#allocation5 + $0x60] sm:$0xf]
    %v869 = vld [vmem:[#allocation5 + $0x64] sm:$0xf]
    %v870 = vld [vmem:[#allocation5 + $0x68] sm:$0xf]
    %v871 = vld [vmem:[#allocation5 + $0x6c] sm:$0xf]
    %v872 = vld [vmem:[#allocation5 + $0x70] sm:$0xf]
    %v873 = vld [vmem:[#allocation5 + $0x74] sm:$0xf]
    %v874 = vld [vmem:[#allocation5 + $0x78] sm:$0xf]
    %v875 = vld [vmem:[#allocation5 + $0x7c] sm:$0xf]
    %v876 = vld [vmem:[#allocation5 + $0x80] sm:$0xf]
    %v877 = vld [vmem:[#allocation5 + $0x84] sm:$0xf]
    %v878 = vld [vmem:[#allocation5 + $0x88] sm:$0xf]
    %v879 = vld [vmem:[#allocation5 + $0x8c] sm:$0xf]
    %v880 = vld [vmem:[#allocation5 + $0x90] sm:$0xf]
    %v881 = vld [vmem:[#allocation5 + $0x94] sm:$0xf]
    %v882 = vld [vmem:[#allocation5 + $0x98] sm:$0xf]
    %v883 = vld [vmem:[#allocation5 + $0x9c] sm:$0xf]
    %v884 = vld [vmem:[#allocation5 + $0xa0] sm:$0xf]
    %v885 = vld [vmem:[#allocation5 + $0xa4] sm:$0xf]
    %v886 = vld [vmem:[#allocation5 + $0xa8] sm:$0xf]
    %v887 = vld [vmem:[#allocation5 + $0xac] sm:$0xf]
    %v888 = vld [vmem:[#allocation5 + $0xb0] sm:$0xf]
    %v889 = vld [vmem:[#allocation5 + $0xb4] sm:$0xf]
    %v890 = vld [vmem:[#allocation5 + $0xb8] sm:$0xf]
    %v891 = vld [vmem:[#allocation5 + $0xbc] sm:$0xf]
    %v892 = vld [vmem:[#allocation5 + $0xc0] sm:$0xf]
    %v893 = vld [vmem:[#allocation5 + $0xc4] sm:$0xf]
    %v894 = vld [vmem:[#allocation5 + $0xc8] sm:$0xf]
    %v895 = vld [vmem:[#allocation5 + $0xcc] sm:$0xf]
    %v896 = vld [vmem:[#allocation5 + $0xd0] sm:$0xf]
    %v897 = vld [vmem:[#allocation5 + $0xd4] sm:$0xf]
    %v898 = vld [vmem:[#allocation5 + $0xd8] sm:$0xf]
    %v899 = vld [vmem:[#allocation5 + $0xdc] sm:$0xf]
    %v900 = vld [vmem:[#allocation5 + $0xe0] sm:$0xf]
    %v901 = vld [vmem:[#allocation5 + $0xe4] sm:$0xf]
    %v902 = vld [vmem:[#allocation5 + $0xe8] sm:$0xf]
    %v903 = vld [vmem:[#allocation5 + $0xec] sm:$0xf]
    %v904 = vld [vmem:[#allocation5 + $0xf0] sm:$0xf]
    %v905 = vld [vmem:[#allocation5 + $0xf4] sm:$0xf]
    %v906 = vld [vmem:[#allocation5 + $0xf8] sm:$0xf]
    %v907 = vld [vmem:[#allocation5 + $0xfc] sm:$0xf]
    %v908 = vld [vmem:[#allocation5 + $0x100] sm:$0xf]
    %v909 = vld [vmem:[#allocation5 + $0x104] sm:$0xf]
    %v910 = vld [vmem:[#allocation5 + $0x108] sm:$0xf]
    %v911 = vld [vmem:[#allocation5 + $0x10c] sm:$0xf]
    %v912 = vld [vmem:[#allocation5 + $0x110] sm:$0xf]
    %v913 = vld [vmem:[#allocation5 + $0x114] sm:$0xf]
    %v914 = vld [vmem:[#allocation5 + $0x118] sm:$0xf]
    %v915 = vld [vmem:[#allocation5 + $0x11c] sm:$0xf]
    %v916 = vld [vmem:[#allocation5 + $0x120] sm:$0xf]
    %v917 = vld [vmem:[#allocation5 + $0x124] sm:$0xf]
    %v918 = vld [vmem:[#allocation5 + $0x128] sm:$0xf]
    %v919 = vld [vmem:[#allocation5 + $0x12c] sm:$0xf]
    %v920 = vld [vmem:[#allocation5 + $0x130] sm:$0xf]
    %v921 = vld [vmem:[#allocation5 + $0x134] sm:$0xf]
    %v922 = vld [vmem:[#allocation5 + $0x138] sm:$0xf]
    %v923 = vld [vmem:[#allocation5 + $0x13c] sm:$0xf]
    %v924 = vld [vmem:[#allocation5 + $0x140] sm:$0xf]
    %v925 = vld [vmem:[#allocation5 + $0x144] sm:$0xf]
    %v926 = vld [vmem:[#allocation5 + $0x148] sm:$0xf]
    %v927 = vld [vmem:[#allocation5 + $0x14c] sm:$0xf]
    %v928 = vld [vmem:[#allocation5 + $0x150] sm:$0xf]
    %v929 = vld [vmem:[#allocation5 + $0x154] sm:$0xf]
    %v930 = vld [vmem:[#allocation5 + $0x158] sm:$0xf]
    %v931 = vld [vmem:[#allocation5 + $0x15c] sm:$0xf]
    %v932 = vld [vmem:[#allocation5 + $0x160] sm:$0xf]
    %v933 = vld [vmem:[#allocation5 + $0x164] sm:$0xf]
    %v934 = vld [vmem:[#allocation5 + $0x168] sm:$0xf]
    %v935 = vld [vmem:[#allocation5 + $0x16c] sm:$0xf]
    %v936 = vld [vmem:[#allocation5 + $0x170] sm:$0xf]
    %v937 = vld [vmem:[#allocation5 + $0x174] sm:$0xf]
    %v938 = vld [vmem:[#allocation5 + $0x178] sm:$0xf]
    %v939 = vld [vmem:[#allocation5 + $0x17c] sm:$0xf]
    %v940 = vld [vmem:[#allocation5 + $0x180] sm:$0xf]
    %v941 = vld [vmem:[#allocation5 + $0x184] sm:$0xf]
    %v942 = vld [vmem:[#allocation5 + $0x188] sm:$0xf]
    %v943 = vld [vmem:[#allocation5 + $0x18c] sm:$0xf]
    %v944 = vld [vmem:[#allocation5 + $0x190] sm:$0xf]
    %v945 = vld [vmem:[#allocation5 + $0x194] sm:$0xf]
    %v946 = vld [vmem:[#allocation5 + $0x198] sm:$0xf]
    %v947 = vld [vmem:[#allocation5 + $0x19c] sm:$0xf]
    %v948 = vld [vmem:[#allocation5 + $0x1a0] sm:$0xf]
    %v949 = vld [vmem:[#allocation5 + $0x1a4] sm:$0xf]
    %v950 = vld [vmem:[#allocation5 + $0x1a8] sm:$0xf]
    %v951 = vld [vmem:[#allocation5 + $0x1ac] sm:$0xf]
    %v952 = vld [vmem:[#allocation5 + $0x1b0] sm:$0xf]
    %v953 = vld [vmem:[#allocation5 + $0x1b4] sm:$0xf]
    %v954 = vld [vmem:[#allocation5 + $0x1b8] sm:$0xf]
    %v955 = vld [vmem:[#allocation5 + $0x1bc] sm:$0xf]
    %v956 = vld [vmem:[#allocation5 + $0x1c0] sm:$0xf]
    %v957 = vld [vmem:[#allocation5 + $0x1c4] sm:$0xf]
    %v958 = vld [vmem:[#allocation5 + $0x1c8] sm:$0xf]
    %v959 = vld [vmem:[#allocation5 + $0x1cc] sm:$0xf]
    %v960 = vld [vmem:[#allocation5 + $0x1d0] sm:$0xf]
    %v961 = vld [vmem:[#allocation5 + $0x1d4] sm:$0xf]
    %v962 = vld [vmem:[#allocation5 + $0x1d8] sm:$0xf]
    %v963 = vld [vmem:[#allocation5 + $0x1dc] sm:$0xf]
    %v964 = vld [vmem:[#allocation5 + $0x1e0] sm:$0xf]
    %v965 = vld [vmem:[#allocation5 + $0x1e4] sm:$0xf]
    %v966 = vld [vmem:[#allocation5 + $0x1e8] sm:$0xf]
    %v967 = vld [vmem:[#allocation5 + $0x1ec] sm:$0xf]
    %v968 = vld [vmem:[#allocation5 + $0x1f0] sm:$0xf]
    %v969 = vld [vmem:[#allocation5 + $0x1f4] sm:$0xf]
    %v970 = vld [vmem:[#allocation5 + $0x1f8] sm:$0xf]
    %v971 = vld [vmem:[#allocation5 + $0x1fc] sm:$0xf]
    %v972 = vld [vmem:[#allocation5 + $0x200] sm:$0xf]
    %v973 = vld [vmem:[#allocation5 + $0x204] sm:$0xf]
    %v974 = vld [vmem:[#allocation5 + $0x208] sm:$0xf]
    %v975 = vld [vmem:[#allocation5 + $0x20c] sm:$0xf]
    %v976 = vld [vmem:[#allocation5 + $0x210] sm:$0xf]
    %v977 = vld [vmem:[#allocation5 + $0x214] sm:$0xf]
    %v978 = vld [vmem:[#allocation5 + $0x218] sm:$0xf]
    %v979 = vld [vmem:[#allocation5 + $0x21c] sm:$0xf]
    %v980 = vld [vmem:[#allocation5 + $0x220] sm:$0xf]
    %v981 = vld [vmem:[#allocation5 + $0x224] sm:$0xf]
    %v982 = vld [vmem:[#allocation5 + $0x228] sm:$0xf]
    %v983 = vld [vmem:[#allocation5 + $0x22c] sm:$0xf]
    %v984 = vld [vmem:[#allocation5 + $0x230] sm:$0xf]
    %v985 = vld [vmem:[#allocation5 + $0x234] sm:$0xf]
    %v986 = vld [vmem:[#allocation5 + $0x238] sm:$0xf]
    %v987 = vld [vmem:[#allocation5 + $0x23c] sm:$0xf]
    %v988 = vld [vmem:[#allocation5 + $0x240] sm:$0xf]
    %v989 = vld [vmem:[#allocation5 + $0x244] sm:$0xf]
    %v990 = vld [vmem:[#allocation5 + $0x248] sm:$0xf]
    %v991 = vld [vmem:[#allocation5 + $0x24c] sm:$0xf]
    %v992 = vld [vmem:[#allocation5 + $0x250] sm:$0xf]
    %v993 = vld [vmem:[#allocation5 + $0x254] sm:$0xf]
    %v994 = vld [vmem:[#allocation5 + $0x258] sm:$0xf]
    %v995 = vld [vmem:[#allocation5 + $0x25c] sm:$0xf]
    %v996 = vld [vmem:[#allocation5 + $0x260] sm:$0xf]
    %v997 = vld [vmem:[#allocation5 + $0x264] sm:$0xf]
    %v998 = vld [vmem:[#allocation5 + $0x268] sm:$0xf]
    %v999 = vld [vmem:[#allocation5 + $0x26c] sm:$0xf]
    %v1000 = vld [vmem:[#allocation5 + $0x270] sm:$0xf]
    %v1001 = vld [vmem:[#allocation5 + $0x274] sm:$0xf]
    %v1002 = vld [vmem:[#allocation5 + $0x278] sm:$0xf]
    %v1003 = vld [vmem:[#allocation5 + $0x27c] sm:$0xf]
    %v1004 = vld [vmem:[#allocation5 + $0x280] sm:$0xf]
    %v1005 = vld [vmem:[#allocation5 + $0x284] sm:$0xf]
    %v1006 = vld [vmem:[#allocation5 + $0x288] sm:$0xf]
    %v1007 = vld [vmem:[#allocation5 + $0x28c] sm:$0xf]
    %v1008 = vld [vmem:[#allocation5 + $0x290] sm:$0xf]
    %v1009 = vld [vmem:[#allocation5 + $0x294] sm:$0xf]
    %v1010 = vld [vmem:[#allocation5 + $0x298] sm:$0xf]
    %v1011 = vld [vmem:[#allocation5 + $0x29c] sm:$0xf]
    %v1012 = vld [vmem:[#allocation5 + $0x2a0] sm:$0xf]
    %v1013 = vld [vmem:[#allocation5 + $0x2a4] sm:$0xf]
    %v1014 = vld [vmem:[#allocation5 + $0x2a8] sm:$0xf]
    %v1015 = vld [vmem:[#allocation5 + $0x2ac] sm:$0xf]
    %v1016 = vld [vmem:[#allocation5 + $0x2b0] sm:$0xf]
    %v1017 = vld [vmem:[#allocation5 + $0x2b4] sm:$0xf]
    %v1018 = vld [vmem:[#allocation5 + $0x2b8] sm:$0xf]
    %v1019 = vld [vmem:[#allocation5 + $0x2bc] sm:$0xf]
    %v1020 = vld [vmem:[#allocation5 + $0x2c0] sm:$0xf]
    %v1021 = vld [vmem:[#allocation5 + $0x2c4] sm:$0xf]
    %v1022 = vld [vmem:[#allocation5 + $0x2c8] sm:$0xf]
    %v1023 = vld [vmem:[#allocation5 + $0x2cc] sm:$0xf]
    %v1024 = vld [vmem:[#allocation5 + $0x2d0] sm:$0xf]
    %v1025 = vld [vmem:[#allocation5 + $0x2d4] sm:$0xf]
    %v1026 = vld [vmem:[#allocation5 + $0x2d8] sm:$0xf]
    %v1027 = vld [vmem:[#allocation5 + $0x2dc] sm:$0xf]
    %v1028 = vld [vmem:[#allocation5 + $0x2e0] sm:$0xf]
    %v1029 = vld [vmem:[#allocation5 + $0x2e4] sm:$0xf]
    %v1030 = vld [vmem:[#allocation5 + $0x2e8] sm:$0xf]
    %v1031 = vld [vmem:[#allocation5 + $0x2ec] sm:$0xf]
    %v1032 = vld [vmem:[#allocation5 + $0x2f0] sm:$0xf]
    %v1033 = vld [vmem:[#allocation5 + $0x2f4] sm:$0xf]
    %v1034 = vld [vmem:[#allocation5 + $0x2f8] sm:$0xf]
    %v1035 = vld [vmem:[#allocation5 + $0x2fc] sm:$0xf]
    %v1036 = vld [vmem:[#allocation5 + $0x300] sm:$0xf]
    %v1037 = vld [vmem:[#allocation5 + $0x304] sm:$0xf]
    %v1038 = vld [vmem:[#allocation5 + $0x308] sm:$0xf]
    %v1039 = vld [vmem:[#allocation5 + $0x30c] sm:$0xf]
    %v1040 = vld [vmem:[#allocation5 + $0x310] sm:$0xf]
    %v1041 = vld [vmem:[#allocation5 + $0x314] sm:$0xf]
    %v1042 = vld [vmem:[#allocation5 + $0x318] sm:$0xf]
    %v1043 = vld [vmem:[#allocation5 + $0x31c] sm:$0xf]
    %v1044 = vld [vmem:[#allocation5 + $0x320] sm:$0xf]
    %v1045 = vld [vmem:[#allocation5 + $0x324] sm:$0xf]
    %v1046 = vld [vmem:[#allocation5 + $0x328] sm:$0xf]
    %v1047 = vld [vmem:[#allocation5 + $0x32c] sm:$0xf]
    %v1048 = vld [vmem:[#allocation5 + $0x330] sm:$0xf]
    %v1049 = vld [vmem:[#allocation5 + $0x334] sm:$0xf]
    %v1050 = vld [vmem:[#allocation5 + $0x338] sm:$0xf]
    %v1051 = vld [vmem:[#allocation5 + $0x33c] sm:$0xf]
    %v1052 = vld [vmem:[#allocation5 + $0x340] sm:$0xf]
    %v1053 = vld [vmem:[#allocation5 + $0x344] sm:$0xf]
    %v1054 = vld [vmem:[#allocation5 + $0x348] sm:$0xf]
    %v1055 = vld [vmem:[#allocation5 + $0x34c] sm:$0xf]
    %v1056 = vld [vmem:[#allocation5 + $0x350] sm:$0xf]
    %v1057 = vld [vmem:[#allocation5 + $0x354] sm:$0xf]
    %v1058 = vld [vmem:[#allocation5 + $0x358] sm:$0xf]
    %v1059 = vld [vmem:[#allocation5 + $0x35c] sm:$0xf]
    %v1060 = vld [vmem:[#allocation5 + $0x360] sm:$0xf]
    %v1061 = vld [vmem:[#allocation5 + $0x364] sm:$0xf]
    %v1062 = vld [vmem:[#allocation5 + $0x368] sm:$0xf]
    %v1063 = vld [vmem:[#allocation5 + $0x36c] sm:$0xf]
    %v1064 = vld [vmem:[#allocation5 + $0x370] sm:$0xf]
    %v1065 = vld [vmem:[#allocation5 + $0x374] sm:$0xf]
    %v1066 = vld [vmem:[#allocation5 + $0x378] sm:$0xf]
    %v1067 = vld [vmem:[#allocation5 + $0x37c] sm:$0xf]
    %v1068 = vld [vmem:[#allocation5 + $0x380] sm:$0xf]
    %v1069 = vld [vmem:[#allocation5 + $0x384] sm:$0xf]
    %v1070 = vld [vmem:[#allocation5 + $0x388] sm:$0xf]
    %v1071 = vld [vmem:[#allocation5 + $0x38c] sm:$0xf]
    %v1072 = vld [vmem:[#allocation5 + $0x390] sm:$0xf]
    %v1073 = vld [vmem:[#allocation5 + $0x394] sm:$0xf]
    %v1074 = vld [vmem:[#allocation5 + $0x398] sm:$0xf]
    %v1075 = vld [vmem:[#allocation5 + $0x39c] sm:$0xf]
    %v1076 = vld [vmem:[#allocation5 + $0x3a0] sm:$0xf]
    %v1077 = vld [vmem:[#allocation5 + $0x3a4] sm:$0xf]
    %v1078 = vld [vmem:[#allocation5 + $0x3a8] sm:$0xf]
    %v1079 = vld [vmem:[#allocation5 + $0x3ac] sm:$0xf]
    %v1080 = vld [vmem:[#allocation5 + $0x3b0] sm:$0xf]
    %v1081 = vld [vmem:[#allocation5 + $0x3b4] sm:$0xf]
    %v1082 = vld [vmem:[#allocation5 + $0x3b8] sm:$0xf]
    %v1083 = vld [vmem:[#allocation5 + $0x3bc] sm:$0xf]
    %v1084 = vld [vmem:[#allocation5 + $0x3c0] sm:$0xf]
    %v1085 = vld [vmem:[#allocation5 + $0x3c4] sm:$0xf]
    %v1086 = vld [vmem:[#allocation5 + $0x3c8] sm:$0xf]
    %v1087 = vld [vmem:[#allocation5 + $0x3cc] sm:$0xf]
    %v1088 = vld [vmem:[#allocation5 + $0x3d0] sm:$0xf]
    %v1089 = vld [vmem:[#allocation5 + $0x3d4] sm:$0xf]
    %v1090 = vld [vmem:[#allocation5 + $0x3d8] sm:$0xf]
    %v1091 = vld [vmem:[#allocation5 + $0x3dc] sm:$0xf]
    %v1092 = vld [vmem:[#allocation5 + $0x3e0] sm:$0xf]
    %v1093 = vld [vmem:[#allocation5 + $0x3e4] sm:$0xf]
    %v1094 = vld [vmem:[#allocation5 + $0x3e8] sm:$0xf]
    %v1095 = vld [vmem:[#allocation5 + $0x3ec] sm:$0xf]
    %v1096 = vld [vmem:[#allocation5 + $0x3f0] sm:$0xf]
    %v1097 = vld [vmem:[#allocation5 + $0x3f4] sm:$0xf]
    %v1098 = vld [vmem:[#allocation5 + $0x3f8] sm:$0xf]
    %v1099 = vld [vmem:[#allocation5 + $0x3fc] sm:$0xf]
    %v1100 = vld [vmem:[#allocation5 + $0x400] sm:$0xf]
    %v1101 = vld [vmem:[#allocation5 + $0x404] sm:$0xf]
    %v1102 = vld [vmem:[#allocation5 + $0x408] sm:$0xf]
    %v1103 = vld [vmem:[#allocation5 + $0x40c] sm:$0xf]
    %v1104 = vld [vmem:[#allocation5 + $0x410] sm:$0xf]
    %v1105 = vld [vmem:[#allocation5 + $0x414] sm:$0xf]
    %v1106 = vld [vmem:[#allocation5 + $0x418] sm:$0xf]
    %v1107 = vld [vmem:[#allocation5 + $0x41c] sm:$0xf]
    %v1108 = vld [vmem:[#allocation5 + $0x420] sm:$0xf]
    %v1109 = vld [vmem:[#allocation5 + $0x424] sm:$0xf]
    %v1110 = vld [vmem:[#allocation5 + $0x428] sm:$0xf]
    %v1111 = vld [vmem:[#allocation5 + $0x42c] sm:$0xf]
    %v1112 = vld [vmem:[#allocation5 + $0x430] sm:$0xf]
    %v1113 = vld [vmem:[#allocation5 + $0x434] sm:$0xf]
    %v1114 = vld [vmem:[#allocation5 + $0x438] sm:$0xf]
    %v1115 = vld [vmem:[#allocation5 + $0x43c] sm:$0xf]
    %v1116 = vld [vmem:[#allocation5 + $0x440] sm:$0xf]
    %v1117 = vld [vmem:[#allocation5 + $0x444] sm:$0xf]
    %v1118 = vld [vmem:[#allocation5 + $0x448] sm:$0xf]
    %v1119 = vld [vmem:[#allocation5 + $0x44c] sm:$0xf]
    %v1120 = vld [vmem:[#allocation5 + $0x450] sm:$0xf]
    %v1121 = vld [vmem:[#allocation5 + $0x454] sm:$0xf]
    %v1122 = vld [vmem:[#allocation5 + $0x458] sm:$0xf]
    %v1123 = vld [vmem:[#allocation5 + $0x45c] sm:$0xf]
    %v1124 = vld [vmem:[#allocation5 + $0x460] sm:$0xf]
    %v1125 = vld [vmem:[#allocation5 + $0x464] sm:$0xf]
    %v1126 = vld [vmem:[#allocation5 + $0x468] sm:$0xf]
    %v1127 = vld [vmem:[#allocation5 + $0x46c] sm:$0xf]
    %v1128 = vld [vmem:[#allocation5 + $0x470] sm:$0xf]
    %v1129 = vld [vmem:[#allocation5 + $0x474] sm:$0xf]
    %v1130 = vld [vmem:[#allocation5 + $0x478] sm:$0xf]
    %v1131 = vld [vmem:[#allocation5 + $0x47c] sm:$0xf]
    %v1132 = vld [vmem:[#allocation5 + $0x480] sm:$0xf]
    %v1133 = vld [vmem:[#allocation5 + $0x484] sm:$0xf]
    %v1134 = vld [vmem:[#allocation5 + $0x488] sm:$0xf]
    %v1135 = vld [vmem:[#allocation5 + $0x48c] sm:$0xf]
    %v1136 = vld [vmem:[#allocation5 + $0x490] sm:$0xf]
    %v1137 = vld [vmem:[#allocation5 + $0x494] sm:$0xf]
    %v1138 = vld [vmem:[#allocation5 + $0x498] sm:$0xf]
    %v1139 = vld [vmem:[#allocation5 + $0x49c] sm:$0xf]
    %v1140 = vld [vmem:[#allocation5 + $0x4a0] sm:$0xf]
    %v1141 = vld [vmem:[#allocation5 + $0x4a4] sm:$0xf]
    %v1142 = vld [vmem:[#allocation5 + $0x4a8] sm:$0xf]
    %v1143 = vld [vmem:[#allocation5 + $0x4ac] sm:$0xf]
    %v1144 = vld [vmem:[#allocation5 + $0x4b0] sm:$0xf]
    %v1145 = vld [vmem:[#allocation5 + $0x4b4] sm:$0xf]
    %v1146 = vld [vmem:[#allocation5 + $0x4b8] sm:$0xf]
    %v1147 = vld [vmem:[#allocation5 + $0x4bc] sm:$0xf]
    %v1148 = vld [vmem:[#allocation5 + $0x4c0] sm:$0xf]
    %v1149 = vld [vmem:[#allocation5 + $0x4c4] sm:$0xf]
    %v1150 = vld [vmem:[#allocation5 + $0x4c8] sm:$0xf]
    %v1151 = vld [vmem:[#allocation5 + $0x4cc] sm:$0xf]
    %v1152 = vld [vmem:[#allocation5 + $0x4d0] sm:$0xf]
    %v1153 = vld [vmem:[#allocation5 + $0x4d4] sm:$0xf]
    %v1154 = vld [vmem:[#allocation5 + $0x4d8] sm:$0xf]
    %v1155 = vld [vmem:[#allocation5 + $0x4dc] sm:$0xf]
    %v1156 = vld [vmem:[#allocation5 + $0x4e0] sm:$0xf]
    %v1157 = vld [vmem:[#allocation5 + $0x4e4] sm:$0xf]
    %v1158 = vld [vmem:[#allocation5 + $0x4e8] sm:$0xf]
    %v1159 = vld [vmem:[#allocation5 + $0x4ec] sm:$0xf]
    %v1160 = vld [vmem:[#allocation5 + $0x4f0] sm:$0xf]
    %v1161 = vld [vmem:[#allocation5 + $0x4f4] sm:$0xf]
    %v1162 = vld [vmem:[#allocation5 + $0x4f8] sm:$0xf]
    %v1163 = vld [vmem:[#allocation5 + $0x4fc] sm:$0xf]
    %v1164 = vld [vmem:[#allocation5 + $0x500] sm:$0xf]
    %v1165 = vld [vmem:[#allocation5 + $0x504] sm:$0xf]
    %v1166 = vld [vmem:[#allocation5 + $0x508] sm:$0xf]
    %v1167 = vld [vmem:[#allocation5 + $0x50c] sm:$0xf]
    %v1168 = vld [vmem:[#allocation5 + $0x510] sm:$0xf]
    %v1169 = vld [vmem:[#allocation5 + $0x514] sm:$0xf]
    %v1170 = vld [vmem:[#allocation5 + $0x518] sm:$0xf]
    %v1171 = vld [vmem:[#allocation5 + $0x51c] sm:$0xf]
    %v1172 = vld [vmem:[#allocation5 + $0x520] sm:$0xf]
    %v1173 = vld [vmem:[#allocation5 + $0x524] sm:$0xf]
    %v1174 = vld [vmem:[#allocation5 + $0x528] sm:$0xf]
    %v1175 = vld [vmem:[#allocation5 + $0x52c] sm:$0xf]
    %v1176 = vld [vmem:[#allocation5 + $0x530] sm:$0xf]
    %v1177 = vld [vmem:[#allocation5 + $0x534] sm:$0xf]
    %v1178 = vld [vmem:[#allocation5 + $0x538] sm:$0xf]
    %v1179 = vld [vmem:[#allocation5 + $0x53c] sm:$0xf]
    %v1180 = vld [vmem:[#allocation5 + $0x540] sm:$0xf]
    %v1181 = vld [vmem:[#allocation5 + $0x544] sm:$0xf]
    %v1182 = vld [vmem:[#allocation5 + $0x548] sm:$0xf]
    %v1183 = vld [vmem:[#allocation5 + $0x54c] sm:$0xf]
    %v1184 = vld [vmem:[#allocation5 + $0x550] sm:$0xf]
    %v1185 = vld [vmem:[#allocation5 + $0x554] sm:$0xf]
    %v1186 = vld [vmem:[#allocation5 + $0x558] sm:$0xf]
    %v1187 = vld [vmem:[#allocation5 + $0x55c] sm:$0xf]
    %v1188 = vld [vmem:[#allocation5 + $0x560] sm:$0xf]
    %v1189 = vld [vmem:[#allocation5 + $0x564] sm:$0xf]
    %v1190 = vld [vmem:[#allocation5 + $0x568] sm:$0xf]
    %v1191 = vld [vmem:[#allocation5 + $0x56c] sm:$0xf]
    %v1192 = vld [vmem:[#allocation5 + $0x570] sm:$0xf]
    %v1193 = vld [vmem:[#allocation5 + $0x574] sm:$0xf]
    %v1194 = vld [vmem:[#allocation5 + $0x578] sm:$0xf]
    %v1195 = vld [vmem:[#allocation5 + $0x57c] sm:$0xf]
    %v1196 = vld [vmem:[#allocation5 + $0x580] sm:$0xf]
    %v1197 = vld [vmem:[#allocation5 + $0x584] sm:$0xf]
    %v1198 = vld [vmem:[#allocation5 + $0x588] sm:$0xf]
    %v1199 = vld [vmem:[#allocation5 + $0x58c] sm:$0xf]
    %v1200 = vld [vmem:[#allocation5 + $0x590] sm:$0xf]
    %v1201 = vld [vmem:[#allocation5 + $0x594] sm:$0xf]
    %v1202 = vld [vmem:[#allocation5 + $0x598] sm:$0xf]
    %v1203 = vld [vmem:[#allocation5 + $0x59c] sm:$0xf]
    %v1204 = vld [vmem:[#allocation5 + $0x5a0] sm:$0xf]
    %v1205 = vld [vmem:[#allocation5 + $0x5a4] sm:$0xf]
    %v1206 = vld [vmem:[#allocation5 + $0x5a8] sm:$0xf]
    %v1207 = vld [vmem:[#allocation5 + $0x5ac] sm:$0xf]
    %v1208 = vld [vmem:[#allocation5 + $0x5b0] sm:$0xf]
    %v1209 = vld [vmem:[#allocation5 + $0x5b4] sm:$0xf]
    %v1210 = vld [vmem:[#allocation5 + $0x5b8] sm:$0xf]
    %v1211 = vld [vmem:[#allocation5 + $0x5bc] sm:$0xf]
    %v1212 = vld [vmem:[#allocation5 + $0x5c0] sm:$0xf]
    %v1213 = vld [vmem:[#allocation5 + $0x5c4] sm:$0xf]
    %v1214 = vld [vmem:[#allocation5 + $0x5c8] sm:$0xf]
    %v1215 = vld [vmem:[#allocation5 + $0x5cc] sm:$0xf]
    %v1216 = vld [vmem:[#allocation5 + $0x5d0] sm:$0xf]
    %v1217 = vld [vmem:[#allocation5 + $0x5d4] sm:$0xf]
    %v1218 = vld [vmem:[#allocation5 + $0x5d8] sm:$0xf]
    %v1219 = vld [vmem:[#allocation5 + $0x5dc] sm:$0xf]
    %v1220 = vld [vmem:[#allocation5 + $0x5e0] sm:$0xf]
    %v1221 = vld [vmem:[#allocation5 + $0x5e4] sm:$0xf]
    %v1222 = vld [vmem:[#allocation5 + $0x5e8] sm:$0xf]
    %v1223 = vld [vmem:[#allocation5 + $0x5ec] sm:$0xf]
    %v1224 = vld [vmem:[#allocation5 + $0x5f0] sm:$0xf]
    %v1225 = vld [vmem:[#allocation5 + $0x5f4] sm:$0xf]
    %v1226 = vld [vmem:[#allocation5 + $0x5f8] sm:$0xf]
    %v1227 = vld [vmem:[#allocation5 + $0x5fc] sm:$0xf]
    %v1228 = vld [vmem:[#allocation5 + $0x600] sm:$0xf]
    %v1229 = vld [vmem:[#allocation5 + $0x604] sm:$0xf]
    %v1230 = vld [vmem:[#allocation5 + $0x608] sm:$0xf]
    %v1231 = vld [vmem:[#allocation5 + $0x60c] sm:$0xf]
    %v1232 = vld [vmem:[#allocation5 + $0x610] sm:$0xf]
    %v1233 = vld [vmem:[#allocation5 + $0x614] sm:$0xf]
    %v1234 = vld [vmem:[#allocation5 + $0x618] sm:$0xf]
    %v1235 = vld [vmem:[#allocation5 + $0x61c] sm:$0xf]
    %v1236 = vld [vmem:[#allocation5 + $0x620] sm:$0xf]
    %v1237 = vld [vmem:[#allocation5 + $0x624] sm:$0xf]
    %v1238 = vld [vmem:[#allocation5 + $0x628] sm:$0xf]
    %v1239 = vld [vmem:[#allocation5 + $0x62c] sm:$0xf]
    %v1240 = vld [vmem:[#allocation5 + $0x630] sm:$0xf]
    %v1241 = vld [vmem:[#allocation5 + $0x634] sm:$0xf]
    %v1242 = vld [vmem:[#allocation5 + $0x638] sm:$0xf]
    %v1243 = vld [vmem:[#allocation5 + $0x63c] sm:$0xf]
    %v1244 = vld [vmem:[#allocation5 + $0x640] sm:$0xf]
    %v1245 = vld [vmem:[#allocation5 + $0x644] sm:$0xf]
    %v1246 = vld [vmem:[#allocation5 + $0x648] sm:$0xf]
    %v1247 = vld [vmem:[#allocation5 + $0x64c] sm:$0xf]
    %v1248 = vld [vmem:[#allocation5 + $0x650] sm:$0xf]
    %v1249 = vld [vmem:[#allocation5 + $0x654] sm:$0xf]
    %v1250 = vld [vmem:[#allocation5 + $0x658] sm:$0xf]
    %v1251 = vld [vmem:[#allocation5 + $0x65c] sm:$0xf]
    %v1252 = vld [vmem:[#allocation5 + $0x660] sm:$0xf]
    %v1253 = vld [vmem:[#allocation5 + $0x664] sm:$0xf]
    %v1254 = vld [vmem:[#allocation5 + $0x668] sm:$0xf]
    %v1255 = vld [vmem:[#allocation5 + $0x66c] sm:$0xf]
    %v1256 = vld [vmem:[#allocation5 + $0x670] sm:$0xf]
    %v1257 = vld [vmem:[#allocation5 + $0x674] sm:$0xf]
    %v1258 = vld [vmem:[#allocation5 + $0x678] sm:$0xf]
    %v1259 = vld [vmem:[#allocation5 + $0x67c] sm:$0xf]
    %v1260 = vld [vmem:[#allocation5 + $0x680] sm:$0xf]
    %v1261 = vld [vmem:[#allocation5 + $0x684] sm:$0xf]
    %v1262 = vld [vmem:[#allocation5 + $0x688] sm:$0xf]
    %v1263 = vld [vmem:[#allocation5 + $0x68c] sm:$0xf]
    %v1264 = vld [vmem:[#allocation5 + $0x690] sm:$0xf]
    %v1265 = vld [vmem:[#allocation5 + $0x694] sm:$0xf]
    %v1266 = vld [vmem:[#allocation5 + $0x698] sm:$0xf]
    %v1267 = vld [vmem:[#allocation5 + $0x69c] sm:$0xf]
    %v1268 = vld [vmem:[#allocation5 + $0x6a0] sm:$0xf]
    %v1269 = vld [vmem:[#allocation5 + $0x6a4] sm:$0xf]
    %v1270 = vld [vmem:[#allocation5 + $0x6a8] sm:$0xf]
    %v1271 = vld [vmem:[#allocation5 + $0x6ac] sm:$0xf]
    %v1272 = vld [vmem:[#allocation5 + $0x6b0] sm:$0xf]
    %v1273 = vld [vmem:[#allocation5 + $0x6b4] sm:$0xf]
    %v1274 = vld [vmem:[#allocation5 + $0x6b8] sm:$0xf]
    %v1275 = vld [vmem:[#allocation5 + $0x6bc] sm:$0xf]
    %v1276 = vld [vmem:[#allocation5 + $0x6c0] sm:$0xf]
    %v1277 = vld [vmem:[#allocation5 + $0x6c4] sm:$0xf]
    %v1278 = vld [vmem:[#allocation5 + $0x6c8] sm:$0xf]
    %v1279 = vld [vmem:[#allocation5 + $0x6cc] sm:$0xf]
    %v1280 = vld [vmem:[#allocation5 + $0x6d0] sm:$0xf]
    %v1281 = vld [vmem:[#allocation5 + $0x6d4] sm:$0xf]
    %v1282 = vld [vmem:[#allocation5 + $0x6d8] sm:$0xf]
    %v1283 = vld [vmem:[#allocation5 + $0x6dc] sm:$0xf]
    %v1284 = vld [vmem:[#allocation5 + $0x6e0] sm:$0xf]
    %v1285 = vld [vmem:[#allocation5 + $0x6e4] sm:$0xf]
    %v1286 = vld [vmem:[#allocation5 + $0x6e8] sm:$0xf]
    %v1287 = vld [vmem:[#allocation5 + $0x6ec] sm:$0xf]
    %v1288 = vld [vmem:[#allocation5 + $0x6f0] sm:$0xf]
    %v1289 = vld [vmem:[#allocation5 + $0x6f4] sm:$0xf]
    %v1290 = vld [vmem:[#allocation5 + $0x6f8] sm:$0xf]
    %v1291 = vld [vmem:[#allocation5 + $0x6fc] sm:$0xf]
    %v1292 = vld [vmem:[#allocation5 + $0x700] sm:$0xf]
    %v1293 = vld [vmem:[#allocation5 + $0x704] sm:$0xf]
    %v1294 = vld [vmem:[#allocation5 + $0x708] sm:$0xf]
    %v1295 = vld [vmem:[#allocation5 + $0x70c] sm:$0xf]
    %v1296 = vld [vmem:[#allocation5 + $0x710] sm:$0xf]
    %v1297 = vld [vmem:[#allocation5 + $0x714] sm:$0xf]
    %v1298 = vld [vmem:[#allocation5 + $0x718] sm:$0xf]
    %v1299 = vld [vmem:[#allocation5 + $0x71c] sm:$0xf]
    %v1300 = vld [vmem:[#allocation5 + $0x720] sm:$0xf]
    %v1301 = vld [vmem:[#allocation5 + $0x724] sm:$0xf]
    %v1302 = vld [vmem:[#allocation5 + $0x728] sm:$0xf]
    %v1303 = vld [vmem:[#allocation5 + $0x72c] sm:$0xf]
    %v1304 = vld [vmem:[#allocation5 + $0x730] sm:$0xf]
    %v1305 = vld [vmem:[#allocation5 + $0x734] sm:$0xf]
    %v1306 = vld [vmem:[#allocation5 + $0x738] sm:$0xf]
    %v1307 = vld [vmem:[#allocation5 + $0x73c] sm:$0xf]
    %v1308 = vld [vmem:[#allocation5 + $0x740] sm:$0xf]
    %v1309 = vld [vmem:[#allocation5 + $0x744] sm:$0xf]
    %v1310 = vld [vmem:[#allocation5 + $0x748] sm:$0xf]
    %v1311 = vld [vmem:[#allocation5 + $0x74c] sm:$0xf]
    %v1312 = vld [vmem:[#allocation5 + $0x750] sm:$0xf]
    %v1313 = vld [vmem:[#allocation5 + $0x754] sm:$0xf]
    %v1314 = vld [vmem:[#allocation5 + $0x758] sm:$0xf]
    %v1315 = vld [vmem:[#allocation5 + $0x75c] sm:$0xf]
    %v1316 = vld [vmem:[#allocation5 + $0x760] sm:$0xf]
    %v1317 = vld [vmem:[#allocation5 + $0x764] sm:$0xf]
    %v1318 = vld [vmem:[#allocation5 + $0x768] sm:$0xf]
    %v1319 = vld [vmem:[#allocation5 + $0x76c] sm:$0xf]
    %v1320 = vld [vmem:[#allocation5 + $0x770] sm:$0xf]
    %v1321 = vld [vmem:[#allocation5 + $0x774] sm:$0xf]
    %v1322 = vld [vmem:[#allocation5 + $0x778] sm:$0xf]
    %v1323 = vld [vmem:[#allocation5 + $0x77c] sm:$0xf]
    %v1324 = vld [vmem:[#allocation5 + $0x780] sm:$0xf]
    %v1325 = vld [vmem:[#allocation5 + $0x784] sm:$0xf]
    %v1326 = vld [vmem:[#allocation5 + $0x788] sm:$0xf]
    %v1327 = vld [vmem:[#allocation5 + $0x78c] sm:$0xf]
    %v1328 = vld [vmem:[#allocation5 + $0x790] sm:$0xf]
    %v1329 = vld [vmem:[#allocation5 + $0x794] sm:$0xf]
    %v1330 = vld [vmem:[#allocation5 + $0x798] sm:$0xf]
    %v1331 = vld [vmem:[#allocation5 + $0x79c] sm:$0xf]
    %v1332 = vld [vmem:[#allocation5 + $0x7a0] sm:$0xf]
    %v1333 = vld [vmem:[#allocation5 + $0x7a4] sm:$0xf]
    %v1334 = vld [vmem:[#allocation5 + $0x7a8] sm:$0xf]
    %v1335 = vld [vmem:[#allocation5 + $0x7ac] sm:$0xf]
    %v1336 = vld [vmem:[#allocation5 + $0x7b0] sm:$0xf]
    %v1337 = vld [vmem:[#allocation5 + $0x7b4] sm:$0xf]
    %v1338 = vld [vmem:[#allocation5 + $0x7b8] sm:$0xf]
    %v1339 = vld [vmem:[#allocation5 + $0x7bc] sm:$0xf]
    %v1340 = vld [vmem:[#allocation5 + $0x7c0] sm:$0xf]
    %v1341 = vld [vmem:[#allocation5 + $0x7c4] sm:$0xf]
    %v1342 = vld [vmem:[#allocation5 + $0x7c8] sm:$0xf]
    %v1343 = vld [vmem:[#allocation5 + $0x7cc] sm:$0xf]
    %v1344 = vld [vmem:[#allocation5 + $0x7d0] sm:$0xf]
    %v1345 = vld [vmem:[#allocation5 + $0x7d4] sm:$0xf]
    %v1346 = vld [vmem:[#allocation5 + $0x7d8] sm:$0xf]
    %v1347 = vld [vmem:[#allocation5 + $0x7dc] sm:$0xf]
    %v1348 = vld [vmem:[#allocation5 + $0x7e0] sm:$0xf]
    %v1349 = vld [vmem:[#allocation5 + $0x7e4] sm:$0xf]
    %v1350 = vld [vmem:[#allocation5 + $0x7e8] sm:$0xf]
    %v1351 = vld [vmem:[#allocation5 + $0x7ec] sm:$0xf]
    %v1352 = vld [vmem:[#allocation5 + $0x7f0] sm:$0xf]
    %v1353 = vld [vmem:[#allocation5 + $0x7f4] sm:$0xf]
    %v1354 = vld [vmem:[#allocation5 + $0x7f8] sm:$0xf]
    %v1355 = vld [vmem:[#allocation5 + $0x7fc] sm:$0xf]
    %v1868 = vunpack.c.l.b16 %v844
    %v1869 = vunpack.c.l.b16 %v845
    %v1870 = vunpack.c.l.b16 %v846
    %v1871 = vunpack.c.l.b16 %v847
    %v1872 = vunpack.c.l.b16 %v848
    %v1873 = vunpack.c.l.b16 %v849
    %v1874 = vunpack.c.l.b16 %v850
    %v1875 = vunpack.c.l.b16 %v851
    %v1876 = vunpack.c.l.b16 %v852
    %v1877 = vunpack.c.l.b16 %v853
    %v1878 = vunpack.c.l.b16 %v854
    %v1879 = vunpack.c.l.b16 %v855
    %v1880 = vunpack.c.l.b16 %v856
    %v1881 = vunpack.c.l.b16 %v857
    %v1882 = vunpack.c.l.b16 %v858
    %v1883 = vunpack.c.l.b16 %v859
    %v1884 = vunpack.c.l.b16 %v860
    %v1885 = vunpack.c.l.b16 %v861
    %v1886 = vunpack.c.l.b16 %v862
    %v1887 = vunpack.c.l.b16 %v863
    %v1888 = vunpack.c.l.b16 %v864
    %v1889 = vunpack.c.l.b16 %v865
    %v1890 = vunpack.c.l.b16 %v866
    %v1891 = vunpack.c.l.b16 %v867
    %v1892 = vunpack.c.l.b16 %v868
    %v1893 = vunpack.c.l.b16 %v869
    %v1894 = vunpack.c.l.b16 %v870
    %v1895 = vunpack.c.l.b16 %v871
    %v1896 = vunpack.c.l.b16 %v872
    %v1897 = vunpack.c.l.b16 %v873
    %v1898 = vunpack.c.l.b16 %v874
    %v1899 = vunpack.c.l.b16 %v875
    %v1900 = vunpack.c.l.b16 %v876
    %v1901 = vunpack.c.l.b16 %v877
    %v1902 = vunpack.c.l.b16 %v878
    %v1903 = vunpack.c.l.b16 %v879
    %v1904 = vunpack.c.l.b16 %v880
    %v1905 = vunpack.c.l.b16 %v881
    %v1906 = vunpack.c.l.b16 %v882
    %v1907 = vunpack.c.l.b16 %v883
    %v1908 = vunpack.c.l.b16 %v884
    %v1909 = vunpack.c.l.b16 %v885
    %v1910 = vunpack.c.l.b16 %v886
    %v1911 = vunpack.c.l.b16 %v887
    %v1912 = vunpack.c.l.b16 %v888
    %v1913 = vunpack.c.l.b16 %v889
    %v1914 = vunpack.c.l.b16 %v890
    %v1915 = vunpack.c.l.b16 %v891
    %v1916 = vunpack.c.l.b16 %v892
    %v1917 = vunpack.c.l.b16 %v893
    %v1918 = vunpack.c.l.b16 %v894
    %v1919 = vunpack.c.l.b16 %v895
    %v1920 = vunpack.c.l.b16 %v896
    %v1921 = vunpack.c.l.b16 %v897
    %v1922 = vunpack.c.l.b16 %v898
    %v1923 = vunpack.c.l.b16 %v899
    %v1924 = vunpack.c.l.b16 %v900
    %v1925 = vunpack.c.l.b16 %v901
    %v1926 = vunpack.c.l.b16 %v902
    %v1927 = vunpack.c.l.b16 %v903
    %v1928 = vunpack.c.l.b16 %v904
    %v1929 = vunpack.c.l.b16 %v905
    %v1930 = vunpack.c.l.b16 %v906
    %v1931 = vunpack.c.l.b16 %v907
    %v1932 = vunpack.c.l.b16 %v908
    %v1933 = vunpack.c.l.b16 %v909
    %v1934 = vunpack.c.l.b16 %v910
    %v1935 = vunpack.c.l.b16 %v911
    %v1936 = vunpack.c.l.b16 %v912
    %v1937 = vunpack.c.l.b16 %v913
    %v1938 = vunpack.c.l.b16 %v914
    %v1939 = vunpack.c.l.b16 %v915
    %v1940 = vunpack.c.l.b16 %v916
    %v1941 = vunpack.c.l.b16 %v917
    %v1942 = vunpack.c.l.b16 %v918
    %v1943 = vunpack.c.l.b16 %v919
    %v1944 = vunpack.c.l.b16 %v920
    %v1945 = vunpack.c.l.b16 %v921
    %v1946 = vunpack.c.l.b16 %v922
    %v1947 = vunpack.c.l.b16 %v923
    %v1948 = vunpack.c.l.b16 %v924
    %v1949 = vunpack.c.l.b16 %v925
    %v1950 = vunpack.c.l.b16 %v926
    %v1951 = vunpack.c.l.b16 %v927
    %v1952 = vunpack.c.l.b16 %v928
    %v1953 = vunpack.c.l.b16 %v929
    %v1954 = vunpack.c.l.b16 %v930
    %v1955 = vunpack.c.l.b16 %v931
    %v1956 = vunpack.c.l.b16 %v932
    %v1957 = vunpack.c.l.b16 %v933
    %v1958 = vunpack.c.l.b16 %v934
    %v1959 = vunpack.c.l.b16 %v935
    %v1960 = vunpack.c.l.b16 %v936
    %v1961 = vunpack.c.l.b16 %v937
    %v1962 = vunpack.c.l.b16 %v938
    %v1963 = vunpack.c.l.b16 %v939
    %v1964 = vunpack.c.l.b16 %v940
    %v1965 = vunpack.c.l.b16 %v941
    %v1966 = vunpack.c.l.b16 %v942
    %v1967 = vunpack.c.l.b16 %v943
    %v1968 = vunpack.c.l.b16 %v944
    %v1969 = vunpack.c.l.b16 %v945
    %v1970 = vunpack.c.l.b16 %v946
    %v1971 = vunpack.c.l.b16 %v947
    %v1972 = vunpack.c.l.b16 %v948
    %v1973 = vunpack.c.l.b16 %v949
    %v1974 = vunpack.c.l.b16 %v950
    %v1975 = vunpack.c.l.b16 %v951
    %v1976 = vunpack.c.l.b16 %v952
    %v1977 = vunpack.c.l.b16 %v953
    %v1978 = vunpack.c.l.b16 %v954
    %v1979 = vunpack.c.l.b16 %v955
    %v1980 = vunpack.c.l.b16 %v956
    %v1981 = vunpack.c.l.b16 %v957
    %v1982 = vunpack.c.l.b16 %v958
    %v1983 = vunpack.c.l.b16 %v959
    %v1984 = vunpack.c.l.b16 %v960
    %v1985 = vunpack.c.l.b16 %v961
    %v1986 = vunpack.c.l.b16 %v962
    %v1987 = vunpack.c.l.b16 %v963
    %v1988 = vunpack.c.l.b16 %v964
    %v1989 = vunpack.c.l.b16 %v965
    %v1990 = vunpack.c.l.b16 %v966
    %v1991 = vunpack.c.l.b16 %v967
    %v1992 = vunpack.c.l.b16 %v968
    %v1993 = vunpack.c.l.b16 %v969
    %v1994 = vunpack.c.l.b16 %v970
    %v1995 = vunpack.c.l.b16 %v971
    %v1996 = vunpack.c.l.b16 %v972
    %v1997 = vunpack.c.l.b16 %v973
    %v1998 = vunpack.c.l.b16 %v974
    %v1999 = vunpack.c.l.b16 %v975
    %v2000 = vunpack.c.l.b16 %v976
    %v2001 = vunpack.c.l.b16 %v977
    %v2002 = vunpack.c.l.b16 %v978
    %v2003 = vunpack.c.l.b16 %v979
    %v2004 = vunpack.c.l.b16 %v980
    %v2005 = vunpack.c.l.b16 %v981
    %v2006 = vunpack.c.l.b16 %v982
    %v2007 = vunpack.c.l.b16 %v983
    %v2008 = vunpack.c.l.b16 %v984
    %v2009 = vunpack.c.l.b16 %v985
    %v2010 = vunpack.c.l.b16 %v986
    %v2011 = vunpack.c.l.b16 %v987
    %v2012 = vunpack.c.l.b16 %v988
    %v2013 = vunpack.c.l.b16 %v989
    %v2014 = vunpack.c.l.b16 %v990
    %v2015 = vunpack.c.l.b16 %v991
    %v2016 = vunpack.c.l.b16 %v992
    %v2017 = vunpack.c.l.b16 %v993
    %v2018 = vunpack.c.l.b16 %v994
    %v2019 = vunpack.c.l.b16 %v995
    %v2020 = vunpack.c.l.b16 %v996
    %v2021 = vunpack.c.l.b16 %v997
    %v2022 = vunpack.c.l.b16 %v998
    %v2023 = vunpack.c.l.b16 %v999
    %v2024 = vunpack.c.l.b16 %v1000
    %v2025 = vunpack.c.l.b16 %v1001
    %v2026 = vunpack.c.l.b16 %v1002
    %v2027 = vunpack.c.l.b16 %v1003
    %v2028 = vunpack.c.l.b16 %v1004
    %v2029 = vunpack.c.l.b16 %v1005
    %v2030 = vunpack.c.l.b16 %v1006
    %v2031 = vunpack.c.l.b16 %v1007
    %v2032 = vunpack.c.l.b16 %v1008
    %v2033 = vunpack.c.l.b16 %v1009
    %v2034 = vunpack.c.l.b16 %v1010
    %v2035 = vunpack.c.l.b16 %v1011
    %v2036 = vunpack.c.l.b16 %v1012
    %v2037 = vunpack.c.l.b16 %v1013
    %v2038 = vunpack.c.l.b16 %v1014
    %v2039 = vunpack.c.l.b16 %v1015
    %v2040 = vunpack.c.l.b16 %v1016
    %v2041 = vunpack.c.l.b16 %v1017
    %v2042 = vunpack.c.l.b16 %v1018
    %v2043 = vunpack.c.l.b16 %v1019
    %v2044 = vunpack.c.l.b16 %v1020
    %v2045 = vunpack.c.l.b16 %v1021
    %v2046 = vunpack.c.l.b16 %v1022
    %v2047 = vunpack.c.l.b16 %v1023
    %v2048 = vunpack.c.l.b16 %v1024
    %v2049 = vunpack.c.l.b16 %v1025
    %v2050 = vunpack.c.l.b16 %v1026
    %v2051 = vunpack.c.l.b16 %v1027
    %v2052 = vunpack.c.l.b16 %v1028
    %v2053 = vunpack.c.l.b16 %v1029
    %v2054 = vunpack.c.l.b16 %v1030
    %v2055 = vunpack.c.l.b16 %v1031
    %v2056 = vunpack.c.l.b16 %v1032
    %v2057 = vunpack.c.l.b16 %v1033
    %v2058 = vunpack.c.l.b16 %v1034
    %v2059 = vunpack.c.l.b16 %v1035
    %v2060 = vunpack.c.l.b16 %v1036
    %v2061 = vunpack.c.l.b16 %v1037
    %v2062 = vunpack.c.l.b16 %v1038
    %v2063 = vunpack.c.l.b16 %v1039
    %v2064 = vunpack.c.l.b16 %v1040
    %v2065 = vunpack.c.l.b16 %v1041
    %v2066 = vunpack.c.l.b16 %v1042
    %v2067 = vunpack.c.l.b16 %v1043
    %v2068 = vunpack.c.l.b16 %v1044
    %v2069 = vunpack.c.l.b16 %v1045
    %v2070 = vunpack.c.l.b16 %v1046
    %v2071 = vunpack.c.l.b16 %v1047
    %v2072 = vunpack.c.l.b16 %v1048
    %v2073 = vunpack.c.l.b16 %v1049
    %v2074 = vunpack.c.l.b16 %v1050
    %v2075 = vunpack.c.l.b16 %v1051
    %v2076 = vunpack.c.l.b16 %v1052
    %v2077 = vunpack.c.l.b16 %v1053
    %v2078 = vunpack.c.l.b16 %v1054
    %v2079 = vunpack.c.l.b16 %v1055
    %v2080 = vunpack.c.l.b16 %v1056
    %v2081 = vunpack.c.l.b16 %v1057
    %v2082 = vunpack.c.l.b16 %v1058
    %v2083 = vunpack.c.l.b16 %v1059
    %v2084 = vunpack.c.l.b16 %v1060
    %v2085 = vunpack.c.l.b16 %v1061
    %v2086 = vunpack.c.l.b16 %v1062
    %v2087 = vunpack.c.l.b16 %v1063
    %v2088 = vunpack.c.l.b16 %v1064
    %v2089 = vunpack.c.l.b16 %v1065
    %v2090 = vunpack.c.l.b16 %v1066
    %v2091 = vunpack.c.l.b16 %v1067
    %v2092 = vunpack.c.l.b16 %v1068
    %v2093 = vunpack.c.l.b16 %v1069
    %v2094 = vunpack.c.l.b16 %v1070
    %v2095 = vunpack.c.l.b16 %v1071
    %v2096 = vunpack.c.l.b16 %v1072
    %v2097 = vunpack.c.l.b16 %v1073
    %v2098 = vunpack.c.l.b16 %v1074
    %v2099 = vunpack.c.l.b16 %v1075
    %v2100 = vunpack.c.l.b16 %v1076
    %v2101 = vunpack.c.l.b16 %v1077
    %v2102 = vunpack.c.l.b16 %v1078
    %v2103 = vunpack.c.l.b16 %v1079
    %v2104 = vunpack.c.l.b16 %v1080
    %v2105 = vunpack.c.l.b16 %v1081
    %v2106 = vunpack.c.l.b16 %v1082
    %v2107 = vunpack.c.l.b16 %v1083
    %v2108 = vunpack.c.l.b16 %v1084
    %v2109 = vunpack.c.l.b16 %v1085
    %v2110 = vunpack.c.l.b16 %v1086
    %v2111 = vunpack.c.l.b16 %v1087
    %v2112 = vunpack.c.l.b16 %v1088
    %v2113 = vunpack.c.l.b16 %v1089
    %v2114 = vunpack.c.l.b16 %v1090
    %v2115 = vunpack.c.l.b16 %v1091
    %v2116 = vunpack.c.l.b16 %v1092
    %v2117 = vunpack.c.l.b16 %v1093
    %v2118 = vunpack.c.l.b16 %v1094
    %v2119 = vunpack.c.l.b16 %v1095
    %v2120 = vunpack.c.l.b16 %v1096
    %v2121 = vunpack.c.l.b16 %v1097
    %v2122 = vunpack.c.l.b16 %v1098
    %v2123 = vunpack.c.l.b16 %v1099
    %v2124 = vunpack.c.l.b16 %v1100
    %v2125 = vunpack.c.l.b16 %v1101
    %v2126 = vunpack.c.l.b16 %v1102
    %v2127 = vunpack.c.l.b16 %v1103
    %v2128 = vunpack.c.l.b16 %v1104
    %v2129 = vunpack.c.l.b16 %v1105
    %v2130 = vunpack.c.l.b16 %v1106
    %v2131 = vunpack.c.l.b16 %v1107
    %v2132 = vunpack.c.l.b16 %v1108
    %v2133 = vunpack.c.l.b16 %v1109
    %v2134 = vunpack.c.l.b16 %v1110
    %v2135 = vunpack.c.l.b16 %v1111
    %v2136 = vunpack.c.l.b16 %v1112
    %v2137 = vunpack.c.l.b16 %v1113
    %v2138 = vunpack.c.l.b16 %v1114
    %v2139 = vunpack.c.l.b16 %v1115
    %v2140 = vunpack.c.l.b16 %v1116
    %v2141 = vunpack.c.l.b16 %v1117
    %v2142 = vunpack.c.l.b16 %v1118
    %v2143 = vunpack.c.l.b16 %v1119
    %v2144 = vunpack.c.l.b16 %v1120
    %v2145 = vunpack.c.l.b16 %v1121
    %v2146 = vunpack.c.l.b16 %v1122
    %v2147 = vunpack.c.l.b16 %v1123
    %v2148 = vunpack.c.l.b16 %v1124
    %v2149 = vunpack.c.l.b16 %v1125
    %v2150 = vunpack.c.l.b16 %v1126
    %v2151 = vunpack.c.l.b16 %v1127
    %v2152 = vunpack.c.l.b16 %v1128
    %v2153 = vunpack.c.l.b16 %v1129
    %v2154 = vunpack.c.l.b16 %v1130
    %v2155 = vunpack.c.l.b16 %v1131
    %v2156 = vunpack.c.l.b16 %v1132
    %v2157 = vunpack.c.l.b16 %v1133
    %v2158 = vunpack.c.l.b16 %v1134
    %v2159 = vunpack.c.l.b16 %v1135
    %v2160 = vunpack.c.l.b16 %v1136
    %v2161 = vunpack.c.l.b16 %v1137
    %v2162 = vunpack.c.l.b16 %v1138
    %v2163 = vunpack.c.l.b16 %v1139
    %v2164 = vunpack.c.l.b16 %v1140
    %v2165 = vunpack.c.l.b16 %v1141
    %v2166 = vunpack.c.l.b16 %v1142
    %v2167 = vunpack.c.l.b16 %v1143
    %v2168 = vunpack.c.l.b16 %v1144
    %v2169 = vunpack.c.l.b16 %v1145
    %v2170 = vunpack.c.l.b16 %v1146
    %v2171 = vunpack.c.l.b16 %v1147
    %v2172 = vunpack.c.l.b16 %v1148
    %v2173 = vunpack.c.l.b16 %v1149
    %v2174 = vunpack.c.l.b16 %v1150
    %v2175 = vunpack.c.l.b16 %v1151
    %v2176 = vunpack.c.l.b16 %v1152
    %v2177 = vunpack.c.l.b16 %v1153
    %v2178 = vunpack.c.l.b16 %v1154
    %v2179 = vunpack.c.l.b16 %v1155
    %v2180 = vunpack.c.l.b16 %v1156
    %v2181 = vunpack.c.l.b16 %v1157
    %v2182 = vunpack.c.l.b16 %v1158
    %v2183 = vunpack.c.l.b16 %v1159
    %v2184 = vunpack.c.l.b16 %v1160
    %v2185 = vunpack.c.l.b16 %v1161
    %v2186 = vunpack.c.l.b16 %v1162
    %v2187 = vunpack.c.l.b16 %v1163
    %v2188 = vunpack.c.l.b16 %v1164
    %v2189 = vunpack.c.l.b16 %v1165
    %v2190 = vunpack.c.l.b16 %v1166
    %v2191 = vunpack.c.l.b16 %v1167
    %v2192 = vunpack.c.l.b16 %v1168
    %v2193 = vunpack.c.l.b16 %v1169
    %v2194 = vunpack.c.l.b16 %v1170
    %v2195 = vunpack.c.l.b16 %v1171
    %v2196 = vunpack.c.l.b16 %v1172
    %v2197 = vunpack.c.l.b16 %v1173
    %v2198 = vunpack.c.l.b16 %v1174
    %v2199 = vunpack.c.l.b16 %v1175
    %v2200 = vunpack.c.l.b16 %v1176
    %v2201 = vunpack.c.l.b16 %v1177
    %v2202 = vunpack.c.l.b16 %v1178
    %v2203 = vunpack.c.l.b16 %v1179
    %v2204 = vunpack.c.l.b16 %v1180
    %v2205 = vunpack.c.l.b16 %v1181
    %v2206 = vunpack.c.l.b16 %v1182
    %v2207 = vunpack.c.l.b16 %v1183
    %v2208 = vunpack.c.l.b16 %v1184
    %v2209 = vunpack.c.l.b16 %v1185
    %v2210 = vunpack.c.l.b16 %v1186
    %v2211 = vunpack.c.l.b16 %v1187
    %v2212 = vunpack.c.l.b16 %v1188
    %v2213 = vunpack.c.l.b16 %v1189
    %v2214 = vunpack.c.l.b16 %v1190
    %v2215 = vunpack.c.l.b16 %v1191
    %v2216 = vunpack.c.l.b16 %v1192
    %v2217 = vunpack.c.l.b16 %v1193
    %v2218 = vunpack.c.l.b16 %v1194
    %v2219 = vunpack.c.l.b16 %v1195
    %v2220 = vunpack.c.l.b16 %v1196
    %v2221 = vunpack.c.l.b16 %v1197
    %v2222 = vunpack.c.l.b16 %v1198
    %v2223 = vunpack.c.l.b16 %v1199
    %v2224 = vunpack.c.l.b16 %v1200
    %v2225 = vunpack.c.l.b16 %v1201
    %v2226 = vunpack.c.l.b16 %v1202
    %v2227 = vunpack.c.l.b16 %v1203
    %v2228 = vunpack.c.l.b16 %v1204
    %v2229 = vunpack.c.l.b16 %v1205
    %v2230 = vunpack.c.l.b16 %v1206
    %v2231 = vunpack.c.l.b16 %v1207
    %v2232 = vunpack.c.l.b16 %v1208
    %v2233 = vunpack.c.l.b16 %v1209
    %v2234 = vunpack.c.l.b16 %v1210
    %v2235 = vunpack.c.l.b16 %v1211
    %v2236 = vunpack.c.l.b16 %v1212
    %v2237 = vunpack.c.l.b16 %v1213
    %v2238 = vunpack.c.l.b16 %v1214
    %v2239 = vunpack.c.l.b16 %v1215
    %v2240 = vunpack.c.l.b16 %v1216
    %v2241 = vunpack.c.l.b16 %v1217
    %v2242 = vunpack.c.l.b16 %v1218
    %v2243 = vunpack.c.l.b16 %v1219
    %v2244 = vunpack.c.l.b16 %v1220
    %v2245 = vunpack.c.l.b16 %v1221
    %v2246 = vunpack.c.l.b16 %v1222
    %v2247 = vunpack.c.l.b16 %v1223
    %v2248 = vunpack.c.l.b16 %v1224
    %v2249 = vunpack.c.l.b16 %v1225
    %v2250 = vunpack.c.l.b16 %v1226
    %v2251 = vunpack.c.l.b16 %v1227
    %v2252 = vunpack.c.l.b16 %v1228
    %v2253 = vunpack.c.l.b16 %v1229
    %v2254 = vunpack.c.l.b16 %v1230
    %v2255 = vunpack.c.l.b16 %v1231
    %v2256 = vunpack.c.l.b16 %v1232
    %v2257 = vunpack.c.l.b16 %v1233
    %v2258 = vunpack.c.l.b16 %v1234
    %v2259 = vunpack.c.l.b16 %v1235
    %v2260 = vunpack.c.l.b16 %v1236
    %v2261 = vunpack.c.l.b16 %v1237
    %v2262 = vunpack.c.l.b16 %v1238
    %v2263 = vunpack.c.l.b16 %v1239
    %v2264 = vunpack.c.l.b16 %v1240
    %v2265 = vunpack.c.l.b16 %v1241
    %v2266 = vunpack.c.l.b16 %v1242
    %v2267 = vunpack.c.l.b16 %v1243
    %v2268 = vunpack.c.l.b16 %v1244
    %v2269 = vunpack.c.l.b16 %v1245
    %v2270 = vunpack.c.l.b16 %v1246
    %v2271 = vunpack.c.l.b16 %v1247
    %v2272 = vunpack.c.l.b16 %v1248
    %v2273 = vunpack.c.l.b16 %v1249
    %v2274 = vunpack.c.l.b16 %v1250
    %v2275 = vunpack.c.l.b16 %v1251
    %v2276 = vunpack.c.l.b16 %v1252
    %v2277 = vunpack.c.l.b16 %v1253
    %v2278 = vunpack.c.l.b16 %v1254
    %v2279 = vunpack.c.l.b16 %v1255
    %v2280 = vunpack.c.l.b16 %v1256
    %v2281 = vunpack.c.l.b16 %v1257
    %v2282 = vunpack.c.l.b16 %v1258
    %v2283 = vunpack.c.l.b16 %v1259
    %v2284 = vunpack.c.l.b16 %v1260
    %v2285 = vunpack.c.l.b16 %v1261
    %v2286 = vunpack.c.l.b16 %v1262
    %v2287 = vunpack.c.l.b16 %v1263
    %v2288 = vunpack.c.l.b16 %v1264
    %v2289 = vunpack.c.l.b16 %v1265
    %v2290 = vunpack.c.l.b16 %v1266
    %v2291 = vunpack.c.l.b16 %v1267
    %v2292 = vunpack.c.l.b16 %v1268
    %v2293 = vunpack.c.l.b16 %v1269
    %v2294 = vunpack.c.l.b16 %v1270
    %v2295 = vunpack.c.l.b16 %v1271
    %v2296 = vunpack.c.l.b16 %v1272
    %v2297 = vunpack.c.l.b16 %v1273
    %v2298 = vunpack.c.l.b16 %v1274
    %v2299 = vunpack.c.l.b16 %v1275
    %v2300 = vunpack.c.l.b16 %v1276
    %v2301 = vunpack.c.l.b16 %v1277
    %v2302 = vunpack.c.l.b16 %v1278
    %v2303 = vunpack.c.l.b16 %v1279
    %v2304 = vunpack.c.l.b16 %v1280
    %v2305 = vunpack.c.l.b16 %v1281
    %v2306 = vunpack.c.l.b16 %v1282
    %v2307 = vunpack.c.l.b16 %v1283
    %v2308 = vunpack.c.l.b16 %v1284
    %v2309 = vunpack.c.l.b16 %v1285
    %v2310 = vunpack.c.l.b16 %v1286
    %v2311 = vunpack.c.l.b16 %v1287
    %v2312 = vunpack.c.l.b16 %v1288
    %v2313 = vunpack.c.l.b16 %v1289
    %v2314 = vunpack.c.l.b16 %v1290
    %v2315 = vunpack.c.l.b16 %v1291
    %v2316 = vunpack.c.l.b16 %v1292
    %v2317 = vunpack.c.l.b16 %v1293
    %v2318 = vunpack.c.l.b16 %v1294
    %v2319 = vunpack.c.l.b16 %v1295
    %v2320 = vunpack.c.l.b16 %v1296
    %v2321 = vunpack.c.l.b16 %v1297
    %v2322 = vunpack.c.l.b16 %v1298
    %v2323 = vunpack.c.l.b16 %v1299
    %v2324 = vunpack.c.l.b16 %v1300
    %v2325 = vunpack.c.l.b16 %v1301
    %v2326 = vunpack.c.l.b16 %v1302
    %v2327 = vunpack.c.l.b16 %v1303
    %v2328 = vunpack.c.l.b16 %v1304
    %v2329 = vunpack.c.l.b16 %v1305
    %v2330 = vunpack.c.l.b16 %v1306
    %v2331 = vunpack.c.l.b16 %v1307
    %v2332 = vunpack.c.l.b16 %v1308
    %v2333 = vunpack.c.l.b16 %v1309
    %v2334 = vunpack.c.l.b16 %v1310
    %v2335 = vunpack.c.l.b16 %v1311
    %v2336 = vunpack.c.l.b16 %v1312
    %v2337 = vunpack.c.l.b16 %v1313
    %v2338 = vunpack.c.l.b16 %v1314
    %v2339 = vunpack.c.l.b16 %v1315
    %v2340 = vunpack.c.l.b16 %v1316
    %v2341 = vunpack.c.l.b16 %v1317
    %v2342 = vunpack.c.l.b16 %v1318
    %v2343 = vunpack.c.l.b16 %v1319
    %v2344 = vunpack.c.l.b16 %v1320
    %v2345 = vunpack.c.l.b16 %v1321
    %v2346 = vunpack.c.l.b16 %v1322
    %v2347 = vunpack.c.l.b16 %v1323
    %v2348 = vunpack.c.l.b16 %v1324
    %v2349 = vunpack.c.l.b16 %v1325
    %v2350 = vunpack.c.l.b16 %v1326
    %v2351 = vunpack.c.l.b16 %v1327
    %v2352 = vunpack.c.l.b16 %v1328
    %v2353 = vunpack.c.l.b16 %v1329
    %v2354 = vunpack.c.l.b16 %v1330
    %v2355 = vunpack.c.l.b16 %v1331
    %v2356 = vunpack.c.l.b16 %v1332
    %v2357 = vunpack.c.l.b16 %v1333
    %v2358 = vunpack.c.l.b16 %v1334
    %v2359 = vunpack.c.l.b16 %v1335
    %v2360 = vunpack.c.l.b16 %v1336
    %v2361 = vunpack.c.l.b16 %v1337
    %v2362 = vunpack.c.l.b16 %v1338
    %v2363 = vunpack.c.l.b16 %v1339
    %v2364 = vunpack.c.l.b16 %v1340
    %v2365 = vunpack.c.l.b16 %v1341
    %v2366 = vunpack.c.l.b16 %v1342
    %v2367 = vunpack.c.l.b16 %v1343
    %v2368 = vunpack.c.l.b16 %v1344
    %v2369 = vunpack.c.l.b16 %v1345
    %v2370 = vunpack.c.l.b16 %v1346
    %v2371 = vunpack.c.l.b16 %v1347
    %v2372 = vunpack.c.l.b16 %v1348
    %v2373 = vunpack.c.l.b16 %v1349
    %v2374 = vunpack.c.l.b16 %v1350
    %v2375 = vunpack.c.l.b16 %v1351
    %v2376 = vunpack.c.l.b16 %v1352
    %v2377 = vunpack.c.l.b16 %v1353
    %v2378 = vunpack.c.l.b16 %v1354
    %v2379 = vunpack.c.l.b16 %v1355
    %v2380 = vpack.c.b16 %v1869, %v1868
    %v2381 = vpack.c.b16 %v1871, %v1870
    %v2382 = vpack.c.b16 %v1873, %v1872
    %v2383 = vpack.c.b16 %v1875, %v1874
    %v2384 = vpack.c.b16 %v1877, %v1876
    %v2385 = vpack.c.b16 %v1879, %v1878
    %v2386 = vpack.c.b16 %v1881, %v1880
    %v2387 = vpack.c.b16 %v1883, %v1882
    %v2388 = vpack.c.b16 %v1885, %v1884
    %v2389 = vpack.c.b16 %v1887, %v1886
    %v2390 = vpack.c.b16 %v1889, %v1888
    %v2391 = vpack.c.b16 %v1891, %v1890
    %v2392 = vpack.c.b16 %v1893, %v1892
    %v2393 = vpack.c.b16 %v1895, %v1894
    %v2394 = vpack.c.b16 %v1897, %v1896
    %v2395 = vpack.c.b16 %v1899, %v1898
    %v2396 = vpack.c.b16 %v1901, %v1900
    %v2397 = vpack.c.b16 %v1903, %v1902
    %v2398 = vpack.c.b16 %v1905, %v1904
    %v2399 = vpack.c.b16 %v1907, %v1906
    %v2400 = vpack.c.b16 %v1909, %v1908
    %v2401 = vpack.c.b16 %v1911, %v1910
    %v2402 = vpack.c.b16 %v1913, %v1912
    %v2403 = vpack.c.b16 %v1915, %v1914
    %v2404 = vpack.c.b16 %v1917, %v1916
    %v2405 = vpack.c.b16 %v1919, %v1918
    %v2406 = vpack.c.b16 %v1921, %v1920
    %v2407 = vpack.c.b16 %v1923, %v1922
    %v2408 = vpack.c.b16 %v1925, %v1924
    %v2409 = vpack.c.b16 %v1927, %v1926
    %v2410 = vpack.c.b16 %v1929, %v1928
    %v2411 = vpack.c.b16 %v1931, %v1930
    %v2412 = vpack.c.b16 %v1933, %v1932
    %v2413 = vpack.c.b16 %v1935, %v1934
    %v2414 = vpack.c.b16 %v1937, %v1936
    %v2415 = vpack.c.b16 %v1939, %v1938
    %v2416 = vpack.c.b16 %v1941, %v1940
    %v2417 = vpack.c.b16 %v1943, %v1942
    %v2418 = vpack.c.b16 %v1945, %v1944
    %v2419 = vpack.c.b16 %v1947, %v1946
    %v2420 = vpack.c.b16 %v1949, %v1948
    %v2421 = vpack.c.b16 %v1951, %v1950
    %v2422 = vpack.c.b16 %v1953, %v1952
    %v2423 = vpack.c.b16 %v1955, %v1954
    %v2424 = vpack.c.b16 %v1957, %v1956
    %v2425 = vpack.c.b16 %v1959, %v1958
    %v2426 = vpack.c.b16 %v1961, %v1960
    %v2427 = vpack.c.b16 %v1963, %v1962
    %v2428 = vpack.c.b16 %v1965, %v1964
    %v2429 = vpack.c.b16 %v1967, %v1966
    %v2430 = vpack.c.b16 %v1969, %v1968
    %v2431 = vpack.c.b16 %v1971, %v1970
    %v2432 = vpack.c.b16 %v1973, %v1972
    %v2433 = vpack.c.b16 %v1975, %v1974
    %v2434 = vpack.c.b16 %v1977, %v1976
    %v2435 = vpack.c.b16 %v1979, %v1978
    %v2436 = vpack.c.b16 %v1981, %v1980
    %v2437 = vpack.c.b16 %v1983, %v1982
    %v2438 = vpack.c.b16 %v1985, %v1984
    %v2439 = vpack.c.b16 %v1987, %v1986
    %v2440 = vpack.c.b16 %v1989, %v1988
    %v2441 = vpack.c.b16 %v1991, %v1990
    %v2442 = vpack.c.b16 %v1993, %v1992
    %v2443 = vpack.c.b16 %v1995, %v1994
    %v2444 = vpack.c.b16 %v1997, %v1996
    %v2445 = vpack.c.b16 %v1999, %v1998
    %v2446 = vpack.c.b16 %v2001, %v2000
    %v2447 = vpack.c.b16 %v2003, %v2002
    %v2448 = vpack.c.b16 %v2005, %v2004
    %v2449 = vpack.c.b16 %v2007, %v2006
    %v2450 = vpack.c.b16 %v2009, %v2008
    %v2451 = vpack.c.b16 %v2011, %v2010
    %v2452 = vpack.c.b16 %v2013, %v2012
    %v2453 = vpack.c.b16 %v2015, %v2014
    %v2454 = vpack.c.b16 %v2017, %v2016
    %v2455 = vpack.c.b16 %v2019, %v2018
    %v2456 = vpack.c.b16 %v2021, %v2020
    %v2457 = vpack.c.b16 %v2023, %v2022
    %v2458 = vpack.c.b16 %v2025, %v2024
    %v2459 = vpack.c.b16 %v2027, %v2026
    %v2460 = vpack.c.b16 %v2029, %v2028
    %v2461 = vpack.c.b16 %v2031, %v2030
    %v2462 = vpack.c.b16 %v2033, %v2032
    %v2463 = vpack.c.b16 %v2035, %v2034
    %v2464 = vpack.c.b16 %v2037, %v2036
    %v2465 = vpack.c.b16 %v2039, %v2038
    %v2466 = vpack.c.b16 %v2041, %v2040
    %v2467 = vpack.c.b16 %v2043, %v2042
    %v2468 = vpack.c.b16 %v2045, %v2044
    %v2469 = vpack.c.b16 %v2047, %v2046
    %v2470 = vpack.c.b16 %v2049, %v2048
    %v2471 = vpack.c.b16 %v2051, %v2050
    %v2472 = vpack.c.b16 %v2053, %v2052
    %v2473 = vpack.c.b16 %v2055, %v2054
    %v2474 = vpack.c.b16 %v2057, %v2056
    %v2475 = vpack.c.b16 %v2059, %v2058
    %v2476 = vpack.c.b16 %v2061, %v2060
    %v2477 = vpack.c.b16 %v2063, %v2062
    %v2478 = vpack.c.b16 %v2065, %v2064
    %v2479 = vpack.c.b16 %v2067, %v2066
    %v2480 = vpack.c.b16 %v2069, %v2068
    %v2481 = vpack.c.b16 %v2071, %v2070
    %v2482 = vpack.c.b16 %v2073, %v2072
    %v2483 = vpack.c.b16 %v2075, %v2074
    %v2484 = vpack.c.b16 %v2077, %v2076
    %v2485 = vpack.c.b16 %v2079, %v2078
    %v2486 = vpack.c.b16 %v2081, %v2080
    %v2487 = vpack.c.b16 %v2083, %v2082
    %v2488 = vpack.c.b16 %v2085, %v2084
    %v2489 = vpack.c.b16 %v2087, %v2086
    %v2490 = vpack.c.b16 %v2089, %v2088
    %v2491 = vpack.c.b16 %v2091, %v2090
    %v2492 = vpack.c.b16 %v2093, %v2092
    %v2493 = vpack.c.b16 %v2095, %v2094
    %v2494 = vpack.c.b16 %v2097, %v2096
    %v2495 = vpack.c.b16 %v2099, %v2098
    %v2496 = vpack.c.b16 %v2101, %v2100
    %v2497 = vpack.c.b16 %v2103, %v2102
    %v2498 = vpack.c.b16 %v2105, %v2104
    %v2499 = vpack.c.b16 %v2107, %v2106
    %v2500 = vpack.c.b16 %v2109, %v2108
    %v2501 = vpack.c.b16 %v2111, %v2110
    %v2502 = vpack.c.b16 %v2113, %v2112
    %v2503 = vpack.c.b16 %v2115, %v2114
    %v2504 = vpack.c.b16 %v2117, %v2116
    %v2505 = vpack.c.b16 %v2119, %v2118
    %v2506 = vpack.c.b16 %v2121, %v2120
    %v2507 = vpack.c.b16 %v2123, %v2122
    %v2508 = vpack.c.b16 %v2125, %v2124
    %v2509 = vpack.c.b16 %v2127, %v2126
    %v2510 = vpack.c.b16 %v2129, %v2128
    %v2511 = vpack.c.b16 %v2131, %v2130
    %v2512 = vpack.c.b16 %v2133, %v2132
    %v2513 = vpack.c.b16 %v2135, %v2134
    %v2514 = vpack.c.b16 %v2137, %v2136
    %v2515 = vpack.c.b16 %v2139, %v2138
    %v2516 = vpack.c.b16 %v2141, %v2140
    %v2517 = vpack.c.b16 %v2143, %v2142
    %v2518 = vpack.c.b16 %v2145, %v2144
    %v2519 = vpack.c.b16 %v2147, %v2146
    %v2520 = vpack.c.b16 %v2149, %v2148
    %v2521 = vpack.c.b16 %v2151, %v2150
    %v2522 = vpack.c.b16 %v2153, %v2152
    %v2523 = vpack.c.b16 %v2155, %v2154
    %v2524 = vpack.c.b16 %v2157, %v2156
    %v2525 = vpack.c.b16 %v2159, %v2158
    %v2526 = vpack.c.b16 %v2161, %v2160
    %v2527 = vpack.c.b16 %v2163, %v2162
    %v2528 = vpack.c.b16 %v2165, %v2164
    %v2529 = vpack.c.b16 %v2167, %v2166
    %v2530 = vpack.c.b16 %v2169, %v2168
    %v2531 = vpack.c.b16 %v2171, %v2170
    %v2532 = vpack.c.b16 %v2173, %v2172
    %v2533 = vpack.c.b16 %v2175, %v2174
    %v2534 = vpack.c.b16 %v2177, %v2176
    %v2535 = vpack.c.b16 %v2179, %v2178
    %v2536 = vpack.c.b16 %v2181, %v2180
    %v2537 = vpack.c.b16 %v2183, %v2182
    %v2538 = vpack.c.b16 %v2185, %v2184
    %v2539 = vpack.c.b16 %v2187, %v2186
    %v2540 = vpack.c.b16 %v2189, %v2188
    %v2541 = vpack.c.b16 %v2191, %v2190
    %v2542 = vpack.c.b16 %v2193, %v2192
    %v2543 = vpack.c.b16 %v2195, %v2194
    %v2544 = vpack.c.b16 %v2197, %v2196
    %v2545 = vpack.c.b16 %v2199, %v2198
    %v2546 = vpack.c.b16 %v2201, %v2200
    %v2547 = vpack.c.b16 %v2203, %v2202
    %v2548 = vpack.c.b16 %v2205, %v2204
    %v2549 = vpack.c.b16 %v2207, %v2206
    %v2550 = vpack.c.b16 %v2209, %v2208
    %v2551 = vpack.c.b16 %v2211, %v2210
    %v2552 = vpack.c.b16 %v2213, %v2212
    %v2553 = vpack.c.b16 %v2215, %v2214
    %v2554 = vpack.c.b16 %v2217, %v2216
    %v2555 = vpack.c.b16 %v2219, %v2218
    %v2556 = vpack.c.b16 %v2221, %v2220
    %v2557 = vpack.c.b16 %v2223, %v2222
    %v2558 = vpack.c.b16 %v2225, %v2224
    %v2559 = vpack.c.b16 %v2227, %v2226
    %v2560 = vpack.c.b16 %v2229, %v2228
    %v2561 = vpack.c.b16 %v2231, %v2230
    %v2562 = vpack.c.b16 %v2233, %v2232
    %v2563 = vpack.c.b16 %v2235, %v2234
    %v2564 = vpack.c.b16 %v2237, %v2236
    %v2565 = vpack.c.b16 %v2239, %v2238
    %v2566 = vpack.c.b16 %v2241, %v2240
    %v2567 = vpack.c.b16 %v2243, %v2242
    %v2568 = vpack.c.b16 %v2245, %v2244
    %v2569 = vpack.c.b16 %v2247, %v2246
    %v2570 = vpack.c.b16 %v2249, %v2248
    %v2571 = vpack.c.b16 %v2251, %v2250
    %v2572 = vpack.c.b16 %v2253, %v2252
    %v2573 = vpack.c.b16 %v2255, %v2254
    %v2574 = vpack.c.b16 %v2257, %v2256
    %v2575 = vpack.c.b16 %v2259, %v2258
    %v2576 = vpack.c.b16 %v2261, %v2260
    %v2577 = vpack.c.b16 %v2263, %v2262
    %v2578 = vpack.c.b16 %v2265, %v2264
    %v2579 = vpack.c.b16 %v2267, %v2266
    %v2580 = vpack.c.b16 %v2269, %v2268
    %v2581 = vpack.c.b16 %v2271, %v2270
    %v2582 = vpack.c.b16 %v2273, %v2272
    %v2583 = vpack.c.b16 %v2275, %v2274
    %v2584 = vpack.c.b16 %v2277, %v2276
    %v2585 = vpack.c.b16 %v2279, %v2278
    %v2586 = vpack.c.b16 %v2281, %v2280
    %v2587 = vpack.c.b16 %v2283, %v2282
    %v2588 = vpack.c.b16 %v2285, %v2284
    %v2589 = vpack.c.b16 %v2287, %v2286
    %v2590 = vpack.c.b16 %v2289, %v2288
    %v2591 = vpack.c.b16 %v2291, %v2290
    %v2592 = vpack.c.b16 %v2293, %v2292
    %v2593 = vpack.c.b16 %v2295, %v2294
    %v2594 = vpack.c.b16 %v2297, %v2296
    %v2595 = vpack.c.b16 %v2299, %v2298
    %v2596 = vpack.c.b16 %v2301, %v2300
    %v2597 = vpack.c.b16 %v2303, %v2302
    %v2598 = vpack.c.b16 %v2305, %v2304
    %v2599 = vpack.c.b16 %v2307, %v2306
    %v2600 = vpack.c.b16 %v2309, %v2308
    %v2601 = vpack.c.b16 %v2311, %v2310
    %v2602 = vpack.c.b16 %v2313, %v2312
    %v2603 = vpack.c.b16 %v2315, %v2314
    %v2604 = vpack.c.b16 %v2317, %v2316
    %v2605 = vpack.c.b16 %v2319, %v2318
    %v2606 = vpack.c.b16 %v2321, %v2320
    %v2607 = vpack.c.b16 %v2323, %v2322
    %v2608 = vpack.c.b16 %v2325, %v2324
    %v2609 = vpack.c.b16 %v2327, %v2326
    %v2610 = vpack.c.b16 %v2329, %v2328
    %v2611 = vpack.c.b16 %v2331, %v2330
    %v2612 = vpack.c.b16 %v2333, %v2332
    %v2613 = vpack.c.b16 %v2335, %v2334
    %v2614 = vpack.c.b16 %v2337, %v2336
    %v2615 = vpack.c.b16 %v2339, %v2338
    %v2616 = vpack.c.b16 %v2341, %v2340
    %v2617 = vpack.c.b16 %v2343, %v2342
    %v2618 = vpack.c.b16 %v2345, %v2344
    %v2619 = vpack.c.b16 %v2347, %v2346
    %v2620 = vpack.c.b16 %v2349, %v2348
    %v2621 = vpack.c.b16 %v2351, %v2350
    %v2622 = vpack.c.b16 %v2353, %v2352
    %v2623 = vpack.c.b16 %v2355, %v2354
    %v2624 = vpack.c.b16 %v2357, %v2356
    %v2625 = vpack.c.b16 %v2359, %v2358
    %v2626 = vpack.c.b16 %v2361, %v2360
    %v2627 = vpack.c.b16 %v2363, %v2362
    %v2628 = vpack.c.b16 %v2365, %v2364
    %v2629 = vpack.c.b16 %v2367, %v2366
    %v2630 = vpack.c.b16 %v2369, %v2368
    %v2631 = vpack.c.b16 %v2371, %v2370
    %v2632 = vpack.c.b16 %v2373, %v2372
    %v2633 = vpack.c.b16 %v2375, %v2374
    %v2634 = vpack.c.b16 %v2377, %v2376
    %v2635 = vpack.c.b16 %v2379, %v2378
    %2892 = vmatprep.subr.bf16.mxu0 0
    %2893 = vmatpush1.bf16.msra.mxu0 %v2387
    %2894 = vmatprep.subr.bf16.mxu0 0
    %2895 = vmatpush1.bf16.msra.mxu0 %v2386
    %2896 = vmatprep.subr.bf16.mxu0 0
    %2897 = vmatpush1.bf16.msra.mxu0 %v2385
    %2898 = vmatprep.subr.bf16.mxu0 0
    %2899 = vmatpush1.bf16.msra.mxu0 %v2384
    %2900 = vmatprep.subr.bf16.mxu0 0
    %2901 = vmatpush1.bf16.msra.mxu0 %v2383
    %2902 = vmatprep.subr.bf16.mxu0 0
    %2903 = vmatpush1.bf16.msra.mxu0 %v2382
    %2904 = vmatprep.subr.bf16.mxu0 0
    %2905 = vmatpush1.bf16.msra.mxu0 %v2381
    %2906 = vmatprep.subr.bf16.mxu0 0
    %2907 = vmatpush1.bf16.msra.mxu0 %v2380
    %2908 = vmatprep.subr.bf16.mxu0 0
    %2909 = vmatpush2.bf16.msra.mxu0 %v2395
    %2910 = vmatprep.subr.bf16.mxu0 0
    %2911 = vmatpush2.bf16.msra.mxu0 %v2394
    %2912 = vmatprep.subr.bf16.mxu0 0
    %2913 = vmatpush2.bf16.msra.mxu0 %v2393
    %2914 = vmatprep.subr.bf16.mxu0 0
    %2915 = vmatpush2.bf16.msra.mxu0 %v2392
    %2916 = vmatprep.subr.bf16.mxu0 0
    %2917 = vmatpush2.bf16.msra.mxu0 %v2391
    %2918 = vmatprep.subr.bf16.mxu0 0
    %2919 = vmatpush2.bf16.msra.mxu0 %v2390
    %2920 = vmatprep.subr.bf16.mxu0 0
    %2921 = vmatpush2.bf16.msra.mxu0 %v2389
    %2922 = vmatprep.subr.bf16.mxu0 0
    %2923 = vmatpush2.bf16.msra.mxu0 %v2388
    %2924 = vmatprep.mubr.bf16.mxu0 %v813
    %2925 = vmatmul.mubr.bf16.gmra.mxu0 %v812
    %v2926 = vpop.f32.mrf.mxu0
    %v2927 = vadd.f32 0.0, %v2926
    %v2928 = vpop.f32.mrf.mxu0
    %v2929 = vpop.f32.mrf.mxu0
    %v2930 = vadd.f32 0.0, %v2929
    %v2931 = vpop.f32.mrf.mxu0
    %2932 = vdwg.mxu0
    %2933 = vmatprep.subr.bf16.mxu0 0
    %2934 = vmatpush1.bf16.msra.mxu0 %v2403
    %2935 = vmatprep.subr.bf16.mxu0 0
    %2936 = vmatpush1.bf16.msra.mxu0 %v2402
    %2937 = vmatprep.subr.bf16.mxu0 0
    %2938 = vmatpush1.bf16.msra.mxu0 %v2401
    %2939 = vmatprep.subr.bf16.mxu0 0
    %2940 = vmatpush1.bf16.msra.mxu0 %v2400
    %2941 = vmatprep.subr.bf16.mxu0 0
    %2942 = vmatpush1.bf16.msra.mxu0 %v2399
    %2943 = vmatprep.subr.bf16.mxu0 0
    %2944 = vmatpush1.bf16.msra.mxu0 %v2398
    %2945 = vmatprep.subr.bf16.mxu0 0
    %2946 = vmatpush1.bf16.msra.mxu0 %v2397
    %2947 = vmatprep.subr.bf16.mxu0 0
    %2948 = vmatpush1.bf16.msra.mxu0 %v2396
    %2949 = vmatprep.subr.bf16.mxu0 0
    %2950 = vmatpush2.bf16.msra.mxu0 %v2411
    %2951 = vmatprep.subr.bf16.mxu0 0
    %2952 = vmatpush2.bf16.msra.mxu0 %v2410
    %2953 = vmatprep.subr.bf16.mxu0 0
    %2954 = vmatpush2.bf16.msra.mxu0 %v2409
    %2955 = vmatprep.subr.bf16.mxu0 0
    %2956 = vmatpush2.bf16.msra.mxu0 %v2408
    %2957 = vmatprep.subr.bf16.mxu0 0
    %2958 = vmatpush2.bf16.msra.mxu0 %v2407
    %2959 = vmatprep.subr.bf16.mxu0 0
    %2960 = vmatpush2.bf16.msra.mxu0 %v2406
    %2961 = vmatprep.subr.bf16.mxu0 0
    %2962 = vmatpush2.bf16.msra.mxu0 %v2405
    %2963 = vmatprep.subr.bf16.mxu0 0
    %2964 = vmatpush2.bf16.msra.mxu0 %v2404
    %2965 = vmatprep.mubr.bf16.mxu0 %v815
    %2966 = vmatmul.mubr.bf16.gmra.mxu0 %v814
    %v2967 = vpop.f32.mrf.mxu0
    %v2968 = vadd.f32 %v2927, %v2967
    %v2969 = vpop.f32.mrf.mxu0
    %v2970 = vpop.f32.mrf.mxu0
    %v2971 = vadd.f32 %v2930, %v2970
    %v2972 = vpop.f32.mrf.mxu0
    %2973 = vdwg.mxu0
    %2974 = vmatprep.subr.bf16.mxu0 0
    %2975 = vmatpush1.bf16.msra.mxu0 %v2419
    %2976 = vmatprep.subr.bf16.mxu0 0
    %2977 = vmatpush1.bf16.msra.mxu0 %v2418
    %2978 = vmatprep.subr.bf16.mxu0 0
    %2979 = vmatpush1.bf16.msra.mxu0 %v2417
    %2980 = vmatprep.subr.bf16.mxu0 0
    %2981 = vmatpush1.bf16.msra.mxu0 %v2416
    %2982 = vmatprep.subr.bf16.mxu0 0
    %2983 = vmatpush1.bf16.msra.mxu0 %v2415
    %2984 = vmatprep.subr.bf16.mxu0 0
    %2985 = vmatpush1.bf16.msra.mxu0 %v2414
    %2986 = vmatprep.subr.bf16.mxu0 0
    %2987 = vmatpush1.bf16.msra.mxu0 %v2413
    %2988 = vmatprep.subr.bf16.mxu0 0
    %2989 = vmatpush1.bf16.msra.mxu0 %v2412
    %2990 = vmatprep.subr.bf16.mxu0 0
    %2991 = vmatpush2.bf16.msra.mxu0 %v2427
    %2992 = vmatprep.subr.bf16.mxu0 0
    %2993 = vmatpush2.bf16.msra.mxu0 %v2426
    %2994 = vmatprep.subr.bf16.mxu0 0
    %2995 = vmatpush2.bf16.msra.mxu0 %v2425
    %2996 = vmatprep.subr.bf16.mxu0 0
    %2997 = vmatpush2.bf16.msra.mxu0 %v2424
    %2998 = vmatprep.subr.bf16.mxu0 0
    %2999 = vmatpush2.bf16.msra.mxu0 %v2423
    %3000 = vmatprep.subr.bf16.mxu0 0
    %3001 = vmatpush2.bf16.msra.mxu0 %v2422
    %3002 = vmatprep.subr.bf16.mxu0 0
    %3003 = vmatpush2.bf16.msra.mxu0 %v2421
    %3004 = vmatprep.subr.bf16.mxu0 0
    %3005 = vmatpush2.bf16.msra.mxu0 %v2420
    %3006 = vmatprep.mubr.bf16.mxu0 %v817
    %3007 = vmatmul.mubr.bf16.gmra.mxu0 %v816
    %v3008 = vpop.f32.mrf.mxu0
    %v3009 = vadd.f32 %v2968, %v3008
    %v3010 = vpop.f32.mrf.mxu0
    %v3011 = vpop.f32.mrf.mxu0
    %v3012 = vadd.f32 %v2971, %v3011
    %v3013 = vpop.f32.mrf.mxu0
    %3014 = vdwg.mxu0
    %3015 = vmatprep.subr.bf16.mxu0 0
    %3016 = vmatpush1.bf16.msra.mxu0 %v2435
    %3017 = vmatprep.subr.bf16.mxu0 0
    %3018 = vmatpush1.bf16.msra.mxu0 %v2434
    %3019 = vmatprep.subr.bf16.mxu0 0
    %3020 = vmatpush1.bf16.msra.mxu0 %v2433
    %3021 = vmatprep.subr.bf16.mxu0 0
    %3022 = vmatpush1.bf16.msra.mxu0 %v2432
    %3023 = vmatprep.subr.bf16.mxu0 0
    %3024 = vmatpush1.bf16.msra.mxu0 %v2431
    %3025 = vmatprep.subr.bf16.mxu0 0
    %3026 = vmatpush1.bf16.msra.mxu0 %v2430
    %3027 = vmatprep.subr.bf16.mxu0 0
    %3028 = vmatpush1.bf16.msra.mxu0 %v2429
    %3029 = vmatprep.subr.bf16.mxu0 0
    %3030 = vmatpush1.bf16.msra.mxu0 %v2428
    %3031 = vmatprep.subr.bf16.mxu0 0
    %3032 = vmatpush2.bf16.msra.mxu0 %v2443
    %3033 = vmatprep.subr.bf16.mxu0 0
    %3034 = vmatpush2.bf16.msra.mxu0 %v2442
    %3035 = vmatprep.subr.bf16.mxu0 0
    %3036 = vmatpush2.bf16.msra.mxu0 %v2441
    %3037 = vmatprep.subr.bf16.mxu0 0
    %3038 = vmatpush2.bf16.msra.mxu0 %v2440
    %3039 = vmatprep.subr.bf16.mxu0 0
    %3040 = vmatpush2.bf16.msra.mxu0 %v2439
    %3041 = vmatprep.subr.bf16.mxu0 0
    %3042 = vmatpush2.bf16.msra.mxu0 %v2438
    %3043 = vmatprep.subr.bf16.mxu0 0
    %3044 = vmatpush2.bf16.msra.mxu0 %v2437
    %3045 = vmatprep.subr.bf16.mxu0 0
    %3046 = vmatpush2.bf16.msra.mxu0 %v2436
    %3047 = vmatprep.mubr.bf16.mxu0 %v819
    %3048 = vmatmul.mubr.bf16.gmra.mxu0 %v818
    %v3049 = vpop.f32.mrf.mxu0
    %v3050 = vadd.f32 %v3009, %v3049
    %v3051 = vpop.f32.mrf.mxu0
    %v3052 = vpop.f32.mrf.mxu0
    %v3053 = vadd.f32 %v3012, %v3052
    %v3054 = vpop.f32.mrf.mxu0
    %3055 = vdwg.mxu0
    %3056 = vmatprep.subr.bf16.mxu0 0
    %3057 = vmatpush1.bf16.msra.mxu0 %v2451
    %3058 = vmatprep.subr.bf16.mxu0 0
    %3059 = vmatpush1.bf16.msra.mxu0 %v2450
    %3060 = vmatprep.subr.bf16.mxu0 0
    %3061 = vmatpush1.bf16.msra.mxu0 %v2449
    %3062 = vmatprep.subr.bf16.mxu0 0
    %3063 = vmatpush1.bf16.msra.mxu0 %v2448
    %3064 = vmatprep.subr.bf16.mxu0 0
    %3065 = vmatpush1.bf16.msra.mxu0 %v2447
    %3066 = vmatprep.subr.bf16.mxu0 0
    %3067 = vmatpush1.bf16.msra.mxu0 %v2446
    %3068 = vmatprep.subr.bf16.mxu0 0
    %3069 = vmatpush1.bf16.msra.mxu0 %v2445
    %3070 = vmatprep.subr.bf16.mxu0 0
    %3071 = vmatpush1.bf16.msra.mxu0 %v2444
    %3072 = vmatprep.subr.bf16.mxu0 0
    %3073 = vmatpush2.bf16.msra.mxu0 %v2459
    %3074 = vmatprep.subr.bf16.mxu0 0
    %3075 = vmatpush2.bf16.msra.mxu0 %v2458
    %3076 = vmatprep.subr.bf16.mxu0 0
    %3077 = vmatpush2.bf16.msra.mxu0 %v2457
    %3078 = vmatprep.subr.bf16.mxu0 0
    %3079 = vmatpush2.bf16.msra.mxu0 %v2456
    %3080 = vmatprep.subr.bf16.mxu0 0
    %3081 = vmatpush2.bf16.msra.mxu0 %v2455
    %3082 = vmatprep.subr.bf16.mxu0 0
    %3083 = vmatpush2.bf16.msra.mxu0 %v2454
    %3084 = vmatprep.subr.bf16.mxu0 0
    %3085 = vmatpush2.bf16.msra.mxu0 %v2453
    %3086 = vmatprep.subr.bf16.mxu0 0
    %3087 = vmatpush2.bf16.msra.mxu0 %v2452
    %3088 = vmatprep.mubr.bf16.mxu0 %v821
    %3089 = vmatmul.mubr.bf16.gmra.mxu0 %v820
    %v3090 = vpop.f32.mrf.mxu0
    %v3091 = vadd.f32 %v3050, %v3090
    %v3092 = vpop.f32.mrf.mxu0
    %v3093 = vpop.f32.mrf.mxu0
    %v3094 = vadd.f32 %v3053, %v3093
    %v3095 = vpop.f32.mrf.mxu0
    %3096 = vdwg.mxu0
    %3097 = vmatprep.subr.bf16.mxu0 0
    %3098 = vmatpush1.bf16.msra.mxu0 %v2467
    %3099 = vmatprep.subr.bf16.mxu0 0
    %3100 = vmatpush1.bf16.msra.mxu0 %v2466
    %3101 = vmatprep.subr.bf16.mxu0 0
    %3102 = vmatpush1.bf16.msra.mxu0 %v2465
    %3103 = vmatprep.subr.bf16.mxu0 0
    %3104 = vmatpush1.bf16.msra.mxu0 %v2464
    %3105 = vmatprep.subr.bf16.mxu0 0
    %3106 = vmatpush1.bf16.msra.mxu0 %v2463
    %3107 = vmatprep.subr.bf16.mxu0 0
    %3108 = vmatpush1.bf16.msra.mxu0 %v2462
    %3109 = vmatprep.subr.bf16.mxu0 0
    %3110 = vmatpush1.bf16.msra.mxu0 %v2461
    %3111 = vmatprep.subr.bf16.mxu0 0
    %3112 = vmatpush1.bf16.msra.mxu0 %v2460
    %3113 = vmatprep.subr.bf16.mxu0 0
    %3114 = vmatpush2.bf16.msra.mxu0 %v2475
    %3115 = vmatprep.subr.bf16.mxu0 0
    %3116 = vmatpush2.bf16.msra.mxu0 %v2474
    %3117 = vmatprep.subr.bf16.mxu0 0
    %3118 = vmatpush2.bf16.msra.mxu0 %v2473
    %3119 = vmatprep.subr.bf16.mxu0 0
    %3120 = vmatpush2.bf16.msra.mxu0 %v2472
    %3121 = vmatprep.subr.bf16.mxu0 0
    %3122 = vmatpush2.bf16.msra.mxu0 %v2471
    %3123 = vmatprep.subr.bf16.mxu0 0
    %3124 = vmatpush2.bf16.msra.mxu0 %v2470
    %3125 = vmatprep.subr.bf16.mxu0 0
    %3126 = vmatpush2.bf16.msra.mxu0 %v2469
    %3127 = vmatprep.subr.bf16.mxu0 0
    %3128 = vmatpush2.bf16.msra.mxu0 %v2468
    %3129 = vmatprep.mubr.bf16.mxu0 %v823
    %3130 = vmatmul.mubr.bf16.gmra.mxu0 %v822
    %v3131 = vpop.f32.mrf.mxu0
    %v3132 = vadd.f32 %v3091, %v3131
    %v3133 = vpop.f32.mrf.mxu0
    %v3134 = vpop.f32.mrf.mxu0
    %v3135 = vadd.f32 %v3094, %v3134
    %v3136 = vpop.f32.mrf.mxu0
    %3137 = vdwg.mxu0
    %3138 = vmatprep.subr.bf16.mxu0 0
    %3139 = vmatpush1.bf16.msra.mxu0 %v2483
    %3140 = vmatprep.subr.bf16.mxu0 0
    %3141 = vmatpush1.bf16.msra.mxu0 %v2482
    %3142 = vmatprep.subr.bf16.mxu0 0
    %3143 = vmatpush1.bf16.msra.mxu0 %v2481
    %3144 = vmatprep.subr.bf16.mxu0 0
    %3145 = vmatpush1.bf16.msra.mxu0 %v2480
    %3146 = vmatprep.subr.bf16.mxu0 0
    %3147 = vmatpush1.bf16.msra.mxu0 %v2479
    %3148 = vmatprep.subr.bf16.mxu0 0
    %3149 = vmatpush1.bf16.msra.mxu0 %v2478
    %3150 = vmatprep.subr.bf16.mxu0 0
    %3151 = vmatpush1.bf16.msra.mxu0 %v2477
    %3152 = vmatprep.subr.bf16.mxu0 0
    %3153 = vmatpush1.bf16.msra.mxu0 %v2476
    %3154 = vmatprep.subr.bf16.mxu0 0
    %3155 = vmatpush2.bf16.msra.mxu0 %v2491
    %3156 = vmatprep.subr.bf16.mxu0 0
    %3157 = vmatpush2.bf16.msra.mxu0 %v2490
    %3158 = vmatprep.subr.bf16.mxu0 0
    %3159 = vmatpush2.bf16.msra.mxu0 %v2489
    %3160 = vmatprep.subr.bf16.mxu0 0
    %3161 = vmatpush2.bf16.msra.mxu0 %v2488
    %3162 = vmatprep.subr.bf16.mxu0 0
    %3163 = vmatpush2.bf16.msra.mxu0 %v2487
    %3164 = vmatprep.subr.bf16.mxu0 0
    %3165 = vmatpush2.bf16.msra.mxu0 %v2486
    %3166 = vmatprep.subr.bf16.mxu0 0
    %3167 = vmatpush2.bf16.msra.mxu0 %v2485
    %3168 = vmatprep.subr.bf16.mxu0 0
    %3169 = vmatpush2.bf16.msra.mxu0 %v2484
    %3170 = vmatprep.mubr.bf16.mxu0 %v825
    %3171 = vmatmul.mubr.bf16.gmra.mxu0 %v824
    %v3172 = vpop.f32.mrf.mxu0
    %v3173 = vadd.f32 %v3132, %v3172
    %v3174 = vpop.f32.mrf.mxu0
    %v3175 = vpop.f32.mrf.mxu0
    %v3176 = vadd.f32 %v3135, %v3175
    %v3177 = vpop.f32.mrf.mxu0
    %3178 = vdwg.mxu0
    %3179 = vmatprep.subr.bf16.mxu0 0
    %3180 = vmatpush1.bf16.msra.mxu0 %v2499
    %3181 = vmatprep.subr.bf16.mxu0 0
    %3182 = vmatpush1.bf16.msra.mxu0 %v2498
    %3183 = vmatprep.subr.bf16.mxu0 0
    %3184 = vmatpush1.bf16.msra.mxu0 %v2497
    %3185 = vmatprep.subr.bf16.mxu0 0
    %3186 = vmatpush1.bf16.msra.mxu0 %v2496
    %3187 = vmatprep.subr.bf16.mxu0 0
    %3188 = vmatpush1.bf16.msra.mxu0 %v2495
    %3189 = vmatprep.subr.bf16.mxu0 0
    %3190 = vmatpush1.bf16.msra.mxu0 %v2494
    %3191 = vmatprep.subr.bf16.mxu0 0
    %3192 = vmatpush1.bf16.msra.mxu0 %v2493
    %3193 = vmatprep.subr.bf16.mxu0 0
    %3194 = vmatpush1.bf16.msra.mxu0 %v2492
    %3195 = vmatprep.subr.bf16.mxu0 0
    %3196 = vmatpush2.bf16.msra.mxu0 %v2507
    %3197 = vmatprep.subr.bf16.mxu0 0
    %3198 = vmatpush2.bf16.msra.mxu0 %v2506
    %3199 = vmatprep.subr.bf16.mxu0 0
    %3200 = vmatpush2.bf16.msra.mxu0 %v2505
    %3201 = vmatprep.subr.bf16.mxu0 0
    %3202 = vmatpush2.bf16.msra.mxu0 %v2504
    %3203 = vmatprep.subr.bf16.mxu0 0
    %3204 = vmatpush2.bf16.msra.mxu0 %v2503
    %3205 = vmatprep.subr.bf16.mxu0 0
    %3206 = vmatpush2.bf16.msra.mxu0 %v2502
    %3207 = vmatprep.subr.bf16.mxu0 0
    %3208 = vmatpush2.bf16.msra.mxu0 %v2501
    %3209 = vmatprep.subr.bf16.mxu0 0
    %3210 = vmatpush2.bf16.msra.mxu0 %v2500
    %3211 = vmatprep.mubr.bf16.mxu0 %v827
    %3212 = vmatmul.mubr.bf16.gmra.mxu0 %v826
    %v3213 = vpop.f32.mrf.mxu0
    %v3214 = vadd.f32 %v3173, %v3213
    %v3215 = vpop.f32.mrf.mxu0
    %v3216 = vpop.f32.mrf.mxu0
    %v3217 = vadd.f32 %v3176, %v3216
    %v3218 = vpop.f32.mrf.mxu0
    %3219 = vdwg.mxu0
    %3220 = vmatprep.subr.bf16.mxu0 0
    %3221 = vmatpush1.bf16.msra.mxu0 %v2515
    %3222 = vmatprep.subr.bf16.mxu0 0
    %3223 = vmatpush1.bf16.msra.mxu0 %v2514
    %3224 = vmatprep.subr.bf16.mxu0 0
    %3225 = vmatpush1.bf16.msra.mxu0 %v2513
    %3226 = vmatprep.subr.bf16.mxu0 0
    %3227 = vmatpush1.bf16.msra.mxu0 %v2512
    %3228 = vmatprep.subr.bf16.mxu0 0
    %3229 = vmatpush1.bf16.msra.mxu0 %v2511
    %3230 = vmatprep.subr.bf16.mxu0 0
    %3231 = vmatpush1.bf16.msra.mxu0 %v2510
    %3232 = vmatprep.subr.bf16.mxu0 0
    %3233 = vmatpush1.bf16.msra.mxu0 %v2509
    %3234 = vmatprep.subr.bf16.mxu0 0
    %3235 = vmatpush1.bf16.msra.mxu0 %v2508
    %3236 = vmatprep.subr.bf16.mxu0 0
    %3237 = vmatpush2.bf16.msra.mxu0 %v2523
    %3238 = vmatprep.subr.bf16.mxu0 0
    %3239 = vmatpush2.bf16.msra.mxu0 %v2522
    %3240 = vmatprep.subr.bf16.mxu0 0
    %3241 = vmatpush2.bf16.msra.mxu0 %v2521
    %3242 = vmatprep.subr.bf16.mxu0 0
    %3243 = vmatpush2.bf16.msra.mxu0 %v2520
    %3244 = vmatprep.subr.bf16.mxu0 0
    %3245 = vmatpush2.bf16.msra.mxu0 %v2519
    %3246 = vmatprep.subr.bf16.mxu0 0
    %3247 = vmatpush2.bf16.msra.mxu0 %v2518
    %3248 = vmatprep.subr.bf16.mxu0 0
    %3249 = vmatpush2.bf16.msra.mxu0 %v2517
    %3250 = vmatprep.subr.bf16.mxu0 0
    %3251 = vmatpush2.bf16.msra.mxu0 %v2516
    %3252 = vmatprep.mubr.bf16.mxu0 %v829
    %3253 = vmatmul.mubr.bf16.gmra.mxu0 %v828
    %v3254 = vpop.f32.mrf.mxu0
    %v3255 = vadd.f32 %v3214, %v3254
    %v3256 = vpop.f32.mrf.mxu0
    %v3257 = vpop.f32.mrf.mxu0
    %v3258 = vadd.f32 %v3217, %v3257
    %v3259 = vpop.f32.mrf.mxu0
    %3260 = vdwg.mxu0
    %3261 = vmatprep.subr.bf16.mxu0 0
    %3262 = vmatpush1.bf16.msra.mxu0 %v2531
    %3263 = vmatprep.subr.bf16.mxu0 0
    %3264 = vmatpush1.bf16.msra.mxu0 %v2530
    %3265 = vmatprep.subr.bf16.mxu0 0
    %3266 = vmatpush1.bf16.msra.mxu0 %v2529
    %3267 = vmatprep.subr.bf16.mxu0 0
    %3268 = vmatpush1.bf16.msra.mxu0 %v2528
    %3269 = vmatprep.subr.bf16.mxu0 0
    %3270 = vmatpush1.bf16.msra.mxu0 %v2527
    %3271 = vmatprep.subr.bf16.mxu0 0
    %3272 = vmatpush1.bf16.msra.mxu0 %v2526
    %3273 = vmatprep.subr.bf16.mxu0 0
    %3274 = vmatpush1.bf16.msra.mxu0 %v2525
    %3275 = vmatprep.subr.bf16.mxu0 0
    %3276 = vmatpush1.bf16.msra.mxu0 %v2524
    %3277 = vmatprep.subr.bf16.mxu0 0
    %3278 = vmatpush2.bf16.msra.mxu0 %v2539
    %3279 = vmatprep.subr.bf16.mxu0 0
    %3280 = vmatpush2.bf16.msra.mxu0 %v2538
    %3281 = vmatprep.subr.bf16.mxu0 0
    %3282 = vmatpush2.bf16.msra.mxu0 %v2537
    %3283 = vmatprep.subr.bf16.mxu0 0
    %3284 = vmatpush2.bf16.msra.mxu0 %v2536
    %3285 = vmatprep.subr.bf16.mxu0 0
    %3286 = vmatpush2.bf16.msra.mxu0 %v2535
    %3287 = vmatprep.subr.bf16.mxu0 0
    %3288 = vmatpush2.bf16.msra.mxu0 %v2534
    %3289 = vmatprep.subr.bf16.mxu0 0
    %3290 = vmatpush2.bf16.msra.mxu0 %v2533
    %3291 = vmatprep.subr.bf16.mxu0 0
    %3292 = vmatpush2.bf16.msra.mxu0 %v2532
    %3293 = vmatprep.mubr.bf16.mxu0 %v831
    %3294 = vmatmul.mubr.bf16.gmra.mxu0 %v830
    %v3295 = vpop.f32.mrf.mxu0
    %v3296 = vadd.f32 %v3255, %v3295
    %v3297 = vpop.f32.mrf.mxu0
    %v3298 = vpop.f32.mrf.mxu0
    %v3299 = vadd.f32 %v3258, %v3298
    %v3300 = vpop.f32.mrf.mxu0
    %3301 = vdwg.mxu0
    %3302 = vmatprep.subr.bf16.mxu0 0
    %3303 = vmatpush1.bf16.msra.mxu0 %v2547
    %3304 = vmatprep.subr.bf16.mxu0 0
    %3305 = vmatpush1.bf16.msra.mxu0 %v2546
    %3306 = vmatprep.subr.bf16.mxu0 0
    %3307 = vmatpush1.bf16.msra.mxu0 %v2545
    %3308 = vmatprep.subr.bf16.mxu0 0
    %3309 = vmatpush1.bf16.msra.mxu0 %v2544
    %3310 = vmatprep.subr.bf16.mxu0 0
    %3311 = vmatpush1.bf16.msra.mxu0 %v2543
    %3312 = vmatprep.subr.bf16.mxu0 0
    %3313 = vmatpush1.bf16.msra.mxu0 %v2542
    %3314 = vmatprep.subr.bf16.mxu0 0
    %3315 = vmatpush1.bf16.msra.mxu0 %v2541
    %3316 = vmatprep.subr.bf16.mxu0 0
    %3317 = vmatpush1.bf16.msra.mxu0 %v2540
    %3318 = vmatprep.subr.bf16.mxu0 0
    %3319 = vmatpush2.bf16.msra.mxu0 %v2555
    %3320 = vmatprep.subr.bf16.mxu0 0
    %3321 = vmatpush2.bf16.msra.mxu0 %v2554
    %3322 = vmatprep.subr.bf16.mxu0 0
    %3323 = vmatpush2.bf16.msra.mxu0 %v2553
    %3324 = vmatprep.subr.bf16.mxu0 0
    %3325 = vmatpush2.bf16.msra.mxu0 %v2552
    %3326 = vmatprep.subr.bf16.mxu0 0
    %3327 = vmatpush2.bf16.msra.mxu0 %v2551
    %3328 = vmatprep.subr.bf16.mxu0 0
    %3329 = vmatpush2.bf16.msra.mxu0 %v2550
    %3330 = vmatprep.subr.bf16.mxu0 0
    %3331 = vmatpush2.bf16.msra.mxu0 %v2549
    %3332 = vmatprep.subr.bf16.mxu0 0
    %3333 = vmatpush2.bf16.msra.mxu0 %v2548
    %3334 = vmatprep.mubr.bf16.mxu0 %v833
    %3335 = vmatmul.mubr.bf16.gmra.mxu0 %v832
    %v3336 = vpop.f32.mrf.mxu0
    %v3337 = vadd.f32 %v3296, %v3336
    %v3338 = vpop.f32.mrf.mxu0
    %v3339 = vpop.f32.mrf.mxu0
    %v3340 = vadd.f32 %v3299, %v3339
    %v3341 = vpop.f32.mrf.mxu0
    %3342 = vdwg.mxu0
    %3343 = vmatprep.subr.bf16.mxu0 0
    %3344 = vmatpush1.bf16.msra.mxu0 %v2563
    %3345 = vmatprep.subr.bf16.mxu0 0
    %3346 = vmatpush1.bf16.msra.mxu0 %v2562
    %3347 = vmatprep.subr.bf16.mxu0 0
    %3348 = vmatpush1.bf16.msra.mxu0 %v2561
    %3349 = vmatprep.subr.bf16.mxu0 0
    %3350 = vmatpush1.bf16.msra.mxu0 %v2560
    %3351 = vmatprep.subr.bf16.mxu0 0
    %3352 = vmatpush1.bf16.msra.mxu0 %v2559
    %3353 = vmatprep.subr.bf16.mxu0 0
    %3354 = vmatpush1.bf16.msra.mxu0 %v2558
    %3355 = vmatprep.subr.bf16.mxu0 0
    %3356 = vmatpush1.bf16.msra.mxu0 %v2557
    %3357 = vmatprep.subr.bf16.mxu0 0
    %3358 = vmatpush1.bf16.msra.mxu0 %v2556
    %3359 = vmatprep.subr.bf16.mxu0 0
    %3360 = vmatpush2.bf16.msra.mxu0 %v2571
    %3361 = vmatprep.subr.bf16.mxu0 0
    %3362 = vmatpush2.bf16.msra.mxu0 %v2570
    %3363 = vmatprep.subr.bf16.mxu0 0
    %3364 = vmatpush2.bf16.msra.mxu0 %v2569
    %3365 = vmatprep.subr.bf16.mxu0 0
    %3366 = vmatpush2.bf16.msra.mxu0 %v2568
    %3367 = vmatprep.subr.bf16.mxu0 0
    %3368 = vmatpush2.bf16.msra.mxu0 %v2567
    %3369 = vmatprep.subr.bf16.mxu0 0
    %3370 = vmatpush2.bf16.msra.mxu0 %v2566
    %3371 = vmatprep.subr.bf16.mxu0 0
    %3372 = vmatpush2.bf16.msra.mxu0 %v2565
    %3373 = vmatprep.subr.bf16.mxu0 0
    %3374 = vmatpush2.bf16.msra.mxu0 %v2564
    %3375 = vmatprep.mubr.bf16.mxu0 %v835
    %3376 = vmatmul.mubr.bf16.gmra.mxu0 %v834
    %v3377 = vpop.f32.mrf.mxu0
    %v3378 = vadd.f32 %v3337, %v3377
    %v3379 = vpop.f32.mrf.mxu0
    %v3380 = vpop.f32.mrf.mxu0
    %v3381 = vadd.f32 %v3340, %v3380
    %v3382 = vpop.f32.mrf.mxu0
    %3383 = vdwg.mxu0
    %3384 = vmatprep.subr.bf16.mxu0 0
    %3385 = vmatpush1.bf16.msra.mxu0 %v2579
    %3386 = vmatprep.subr.bf16.mxu0 0
    %3387 = vmatpush1.bf16.msra.mxu0 %v2578
    %3388 = vmatprep.subr.bf16.mxu0 0
    %3389 = vmatpush1.bf16.msra.mxu0 %v2577
    %3390 = vmatprep.subr.bf16.mxu0 0
    %3391 = vmatpush1.bf16.msra.mxu0 %v2576
    %3392 = vmatprep.subr.bf16.mxu0 0
    %3393 = vmatpush1.bf16.msra.mxu0 %v2575
    %3394 = vmatprep.subr.bf16.mxu0 0
    %3395 = vmatpush1.bf16.msra.mxu0 %v2574
    %3396 = vmatprep.subr.bf16.mxu0 0
    %3397 = vmatpush1.bf16.msra.mxu0 %v2573
    %3398 = vmatprep.subr.bf16.mxu0 0
    %3399 = vmatpush1.bf16.msra.mxu0 %v2572
    %3400 = vmatprep.subr.bf16.mxu0 0
    %3401 = vmatpush2.bf16.msra.mxu0 %v2587
    %3402 = vmatprep.subr.bf16.mxu0 0
    %3403 = vmatpush2.bf16.msra.mxu0 %v2586
    %3404 = vmatprep.subr.bf16.mxu0 0
    %3405 = vmatpush2.bf16.msra.mxu0 %v2585
    %3406 = vmatprep.subr.bf16.mxu0 0
    %3407 = vmatpush2.bf16.msra.mxu0 %v2584
    %3408 = vmatprep.subr.bf16.mxu0 0
    %3409 = vmatpush2.bf16.msra.mxu0 %v2583
    %3410 = vmatprep.subr.bf16.mxu0 0
    %3411 = vmatpush2.bf16.msra.mxu0 %v2582
    %3412 = vmatprep.subr.bf16.mxu0 0
    %3413 = vmatpush2.bf16.msra.mxu0 %v2581
    %3414 = vmatprep.subr.bf16.mxu0 0
    %3415 = vmatpush2.bf16.msra.mxu0 %v2580
    %3416 = vmatprep.mubr.bf16.mxu0 %v837
    %3417 = vmatmul.mubr.bf16.gmra.mxu0 %v836
    %v3418 = vpop.f32.mrf.mxu0
    %v3419 = vadd.f32 %v3378, %v3418
    %v3420 = vpop.f32.mrf.mxu0
    %v3421 = vpop.f32.mrf.mxu0
    %v3422 = vadd.f32 %v3381, %v3421
    %v3423 = vpop.f32.mrf.mxu0
    %3424 = vdwg.mxu0
    %3425 = vmatprep.subr.bf16.mxu0 0
    %3426 = vmatpush1.bf16.msra.mxu0 %v2595
    %3427 = vmatprep.subr.bf16.mxu0 0
    %3428 = vmatpush1.bf16.msra.mxu0 %v2594
    %3429 = vmatprep.subr.bf16.mxu0 0
    %3430 = vmatpush1.bf16.msra.mxu0 %v2593
    %3431 = vmatprep.subr.bf16.mxu0 0
    %3432 = vmatpush1.bf16.msra.mxu0 %v2592
    %3433 = vmatprep.subr.bf16.mxu0 0
    %3434 = vmatpush1.bf16.msra.mxu0 %v2591
    %3435 = vmatprep.subr.bf16.mxu0 0
    %3436 = vmatpush1.bf16.msra.mxu0 %v2590
    %3437 = vmatprep.subr.bf16.mxu0 0
    %3438 = vmatpush1.bf16.msra.mxu0 %v2589
    %3439 = vmatprep.subr.bf16.mxu0 0
    %3440 = vmatpush1.bf16.msra.mxu0 %v2588
    %3441 = vmatprep.subr.bf16.mxu0 0
    %3442 = vmatpush2.bf16.msra.mxu0 %v2603
    %3443 = vmatprep.subr.bf16.mxu0 0
    %3444 = vmatpush2.bf16.msra.mxu0 %v2602
    %3445 = vmatprep.subr.bf16.mxu0 0
    %3446 = vmatpush2.bf16.msra.mxu0 %v2601
    %3447 = vmatprep.subr.bf16.mxu0 0
    %3448 = vmatpush2.bf16.msra.mxu0 %v2600
    %3449 = vmatprep.subr.bf16.mxu0 0
    %3450 = vmatpush2.bf16.msra.mxu0 %v2599
    %3451 = vmatprep.subr.bf16.mxu0 0
    %3452 = vmatpush2.bf16.msra.mxu0 %v2598
    %3453 = vmatprep.subr.bf16.mxu0 0
    %3454 = vmatpush2.bf16.msra.mxu0 %v2597
    %3455 = vmatprep.subr.bf16.mxu0 0
    %3456 = vmatpush2.bf16.msra.mxu0 %v2596
    %3457 = vmatprep.mubr.bf16.mxu0 %v839
    %3458 = vmatmul.mubr.bf16.gmra.mxu0 %v838
    %v3459 = vpop.f32.mrf.mxu0
    %v3460 = vadd.f32 %v3419, %v3459
    %v3461 = vpop.f32.mrf.mxu0
    %v3462 = vpop.f32.mrf.mxu0
    %v3463 = vadd.f32 %v3422, %v3462
    %v3464 = vpop.f32.mrf.mxu0
    %3465 = vdwg.mxu0
    %3466 = vmatprep.subr.bf16.mxu0 0
    %3467 = vmatpush1.bf16.msra.mxu0 %v2611
    %3468 = vmatprep.subr.bf16.mxu0 0
    %3469 = vmatpush1.bf16.msra.mxu0 %v2610
    %3470 = vmatprep.subr.bf16.mxu0 0
    %3471 = vmatpush1.bf16.msra.mxu0 %v2609
    %3472 = vmatprep.subr.bf16.mxu0 0
    %3473 = vmatpush1.bf16.msra.mxu0 %v2608
    %3474 = vmatprep.subr.bf16.mxu0 0
    %3475 = vmatpush1.bf16.msra.mxu0 %v2607
    %3476 = vmatprep.subr.bf16.mxu0 0
    %3477 = vmatpush1.bf16.msra.mxu0 %v2606
    %3478 = vmatprep.subr.bf16.mxu0 0
    %3479 = vmatpush1.bf16.msra.mxu0 %v2605
    %3480 = vmatprep.subr.bf16.mxu0 0
    %3481 = vmatpush1.bf16.msra.mxu0 %v2604
    %3482 = vmatprep.subr.bf16.mxu0 0
    %3483 = vmatpush2.bf16.msra.mxu0 %v2619
    %3484 = vmatprep.subr.bf16.mxu0 0
    %3485 = vmatpush2.bf16.msra.mxu0 %v2618
    %3486 = vmatprep.subr.bf16.mxu0 0
    %3487 = vmatpush2.bf16.msra.mxu0 %v2617
    %3488 = vmatprep.subr.bf16.mxu0 0
    %3489 = vmatpush2.bf16.msra.mxu0 %v2616
    %3490 = vmatprep.subr.bf16.mxu0 0
    %3491 = vmatpush2.bf16.msra.mxu0 %v2615
    %3492 = vmatprep.subr.bf16.mxu0 0
    %3493 = vmatpush2.bf16.msra.mxu0 %v2614
    %3494 = vmatprep.subr.bf16.mxu0 0
    %3495 = vmatpush2.bf16.msra.mxu0 %v2613
    %3496 = vmatprep.subr.bf16.mxu0 0
    %3497 = vmatpush2.bf16.msra.mxu0 %v2612
    %3498 = vmatprep.mubr.bf16.mxu0 %v841
    %3499 = vmatmul.mubr.bf16.gmra.mxu0 %v840
    %v3500 = vpop.f32.mrf.mxu0
    %v3501 = vadd.f32 %v3460, %v3500
    %v3502 = vpop.f32.mrf.mxu0
    %v3503 = vpop.f32.mrf.mxu0
    %v3504 = vadd.f32 %v3463, %v3503
    %v3505 = vpop.f32.mrf.mxu0
    %3506 = vdwg.mxu0
    %3507 = vmatprep.subr.bf16.mxu0 0
    %3508 = vmatpush1.bf16.msra.mxu0 %v2627
    %3509 = vmatprep.subr.bf16.mxu0 0
    %3510 = vmatpush1.bf16.msra.mxu0 %v2626
    %3511 = vmatprep.subr.bf16.mxu0 0
    %3512 = vmatpush1.bf16.msra.mxu0 %v2625
    %3513 = vmatprep.subr.bf16.mxu0 0
    %3514 = vmatpush1.bf16.msra.mxu0 %v2624
    %3515 = vmatprep.subr.bf16.mxu0 0
    %3516 = vmatpush1.bf16.msra.mxu0 %v2623
    %3517 = vmatprep.subr.bf16.mxu0 0
    %3518 = vmatpush1.bf16.msra.mxu0 %v2622
    %3519 = vmatprep.subr.bf16.mxu0 0
    %3520 = vmatpush1.bf16.msra.mxu0 %v2621
    %3521 = vmatprep.subr.bf16.mxu0 0
    %3522 = vmatpush1.bf16.msra.mxu0 %v2620
    %3523 = vmatprep.subr.bf16.mxu0 0
    %3524 = vmatpush2.bf16.msra.mxu0 %v2635
    %3525 = vmatprep.subr.bf16.mxu0 0
    %3526 = vmatpush2.bf16.msra.mxu0 %v2634
    %3527 = vmatprep.subr.bf16.mxu0 0
    %3528 = vmatpush2.bf16.msra.mxu0 %v2633
    %3529 = vmatprep.subr.bf16.mxu0 0
    %3530 = vmatpush2.bf16.msra.mxu0 %v2632
    %3531 = vmatprep.subr.bf16.mxu0 0
    %3532 = vmatpush2.bf16.msra.mxu0 %v2631
    %3533 = vmatprep.subr.bf16.mxu0 0
    %3534 = vmatpush2.bf16.msra.mxu0 %v2630
    %3535 = vmatprep.subr.bf16.mxu0 0
    %3536 = vmatpush2.bf16.msra.mxu0 %v2629
    %3537 = vmatprep.subr.bf16.mxu0 0
    %3538 = vmatpush2.bf16.msra.mxu0 %v2628
    %3539 = vmatprep.mubr.bf16.mxu0 %v843
    %3540 = vmatmul.mubr.bf16.gmra.mxu0 %v842
    %v3541 = vpop.f32.mrf.mxu0
    %v3542 = vadd.f32 %v3501, %v3541
    %v3543 = vpop.f32.mrf.mxu0
    %v3544 = vpop.f32.mrf.mxu0
    %v3545 = vadd.f32 %v3504, %v3544
    %v3546 = vpop.f32.mrf.mxu0
    %3547 = vdwg.mxu0
    %v3548 = vpack.c.bf16 %v3545, %v3542
    %v3550 = vcombine.high %v3548, %v3548
    %v3552 = vunpack.c.l.s4 1966171168
    %v3553 = vunpack.c.0.s8 %v3552
    %v3554 = vlaneseq
    %v3555 = vshrl.u32 %v3554, 7
    %v3556 = vsub.s32 %v3553, %v3555
    %v3557 = vrot.slane %v3548, %v3556
    %v3559 = vunpack.c.l.s4 1966171168
    %v3560 = vunpack.c.0.s8 %v3559
    %v3561 = vlaneseq
    %v3562 = vshrl.u32 %v3561, 7
    %v3563 = vsub.s32 %v3560, %v3562
    %v3564 = vrot.slane %v3550, %v3563
    %v3565 = vcombine.high %v3557, %v3557
    %v3566 = vcombine.high %v3564, %v3564
    %v3568 = vunpack.c.l.s4 1966171168
    %v3569 = vunpack.c.0.s8 %v3568
    %v3570 = vlaneseq
    %v3571 = vshrl.u32 %v3570, 7
    %v3572 = vsub.s32 %v3569, %v3571
    %v3573 = vrot.slane %v3557, %v3572
    %v3575 = vunpack.c.l.s4 1966171168
    %v3576 = vunpack.c.0.s8 %v3575
    %v3577 = vlaneseq
    %v3578 = vshrl.u32 %v3577, 7
    %v3579 = vsub.s32 %v3576, %v3578
    %v3580 = vrot.slane %v3564, %v3579
    %v3582 = vunpack.c.l.s4 1966171168
    %v3583 = vunpack.c.0.s8 %v3582
    %v3584 = vlaneseq
    %v3585 = vshrl.u32 %v3584, 7
    %v3586 = vsub.s32 %v3583, %v3585
    %v3587 = vrot.slane %v3565, %v3586
    %v3589 = vunpack.c.l.s4 1966171168
    %v3590 = vunpack.c.0.s8 %v3589
    %v3591 = vlaneseq
    %v3592 = vshrl.u32 %v3591, 7
    %v3593 = vsub.s32 %v3590, %v3592
    %v3594 = vrot.slane %v3566, %v3593
    %v3595 = vcombine.high %v3573, %v3573
    %v3596 = vcombine.high %v3580, %v3580
    %v3597 = vcombine.high %v3587, %v3587
    %v3598 = vcombine.high %v3594, %v3594
    %3607 = vst [vmem:[#allocation7] sm:$0x1] %v3573
    %3608 = vst [vmem:[#allocation7 + $0x1] sm:$0x1] %v3587
    %3609 = vst [vmem:[#allocation7 + $0x2] sm:$0x1] %v3595
    %3610 = vst [vmem:[#allocation7 + $0x3] sm:$0x1] %v3597
    %3611 = vst [vmem:[#allocation7 + $0x4] sm:$0x1] %v3580
    %3612 = vst [vmem:[#allocation7 + $0x5] sm:$0x1] %v3594
    %3613 = vst [vmem:[#allocation7 + $0x6] sm:$0x1] %v3596
    %3614 = vst [vmem:[#allocation7 + $0x7] sm:$0x1] %v3598
    %s3615 = smul.u32 0, 16
    %v3616 = vlaneseq
    %v3617 = vshrl.u32 %v3616, 7
    %v3618 = vadd.s32 %v3617, 8
    %v3619 = vstv %s3615
    %v3620 = vadd.s32 %v3619, %v3617
    %v3621 = vadd.s32 %v3619, %v3618
    %vm3622 = vcmp.lt.s32.totalorder %v3620, 2
    %vm3623 = vcmp.lt.s32.totalorder %v3621, 2
    %v3624 = vsel %vm3622, 1, 0
    %v3625 = vsel %vm3623, 1, 0
    %vm3626 = vcmp.eq.s32.totalorder %v3624, 1
    %vm3627 = vcmp.eq.s32.totalorder %v3625, 1
    %v3628 = vsel %vm3626, %v3542, 0.0
    %v3629 = vsel %vm3627, %v3545, 0.0
    %v3630 = vadd.f32 %v3628, %v3629
    %v3631 = vrot.slane %v3630, 4
    %v3632 = vadd.f32 %v3630, %v3631
    %v3633 = vrot.slane %v3632, 2
    %v3634 = vadd.f32 %v3632, %v3633
    %v3635 = vrot.slane %v3634, 1
    %v3636 = vadd.f32 %v3634, %v3635
    %v3637 = vmul.f32 %v3628, %v3628
    %v3638 = vmul.f32 %v3629, %v3629
    %v3639 = vadd.f32 %v3637, %v3638
    %v3640 = vrot.slane %v3639, 4
    %v3641 = vadd.f32 %v3639, %v3640
    %v3642 = vrot.slane %v3641, 2
    %v3643 = vadd.f32 %v3641, %v3642
    %v3644 = vrot.slane %v3643, 1
    %v3645 = vadd.f32 %v3643, %v3644
    %v3648 = vcombine.low %v3636, %v3645
    %v3650 = vunpack.c.l.s4 1966171168
    %v3651 = vunpack.c.0.s8 %v3650
    %v3652 = vlaneseq
    %v3653 = vshrl.u32 %v3652, 7
    %v3654 = vsub.s32 %v3651, %v3653
    %v3655 = vrot.slane %v3648, %v3654
    %v3657 = vunpack.c.l.s4 1966171168
    %v3658 = vunpack.c.0.s8 %v3657
    %v3659 = vlaneseq
    %v3660 = vshrl.u32 %v3659, 7
    %v3661 = vsub.s32 %v3658, %v3660
    %v3662 = vrot.slane %v3655, %v3661
    %v3664 = vlaneseq
    %vm3665 = vcmp.ge.s32.totalorder %v3664, 0
    %vm3666 = vcmp.lt.s32.totalorder %v3664, 256
    %vm3667 = vmand %vm3665, %vm3666
    %3668 = vst.msk [vmem:[#allocation8] sm:$0x3] %vm3667, %v3662
    // Predicated region
    $region18: #{tpu_custom_call.1} parent=1 // pred_check
      _
    $region19: #{tpu_custom_call.1} parent=1 // pred_check_branch
      %3670 = sbr.rel (0) target = $region21
    $region20: #{tpu_custom_call.1} parent=1 // pred_region
      %s3672 = ssub.s32 128, 16
      %3673 = vsyncadd [#allocation4], %s3672
      %s3674 = sshll.u32 [#allocation7], 4
      %s3675 = int_to_ptr.vmem [resolvable:$true] %s3674
      %3680 = dma.vmem_to_hbm [thread:$0]  %s3675, 16, %s2, [#allocation4], 16, 16, 1
    $region21: #{tpu_custom_call.1} parent=1 // pred_fallthru
      _
    // Predicated region
    $region22: #{tpu_custom_call.1} parent=1 // pred_check
      _
    $region23: #{tpu_custom_call.1} parent=1 // pred_check_branch
      %3682 = sbr.rel (0) target = $region25
    $region24: #{tpu_custom_call.1} parent=1 // pred_region
      %s3684 = ssub.s32 32, 32
      %3685 = vsyncadd [#allocation9], %s3684
      %s3687 = sshll.u32 [#allocation8], 4
      %s3688 = int_to_ptr.vmem [resolvable:$true] %s3687
      %3690 = dma.vmem_to_hbm [thread:$0]  %s3688, 32, %s3, [#allocation9]
    $region25: #{tpu_custom_call.1} parent=1 // pred_fallthru
      _
    // Predicated region
    $region26: #{tpu_custom_call.1} parent=1 // pred_check
      _
    $region27: #{tpu_custom_call.1} parent=1 // pred_check_branch
      %3692 = sbr.rel (0) target = $region29
    $region28: #{tpu_custom_call.1} parent=1 // pred_region
      %3693 = dma.done [#allocation4], 128
    $region29: #{tpu_custom_call.1} parent=1 // pred_fallthru
      _
    // Predicated region
    $region30: #{tpu_custom_call.1} parent=1 // pred_check
      _
    $region31: #{tpu_custom_call.1} parent=1 // pred_check_branch
      %3695 = sbr.rel (0) target = $region33
    $region32: #{tpu_custom_call.1} parent=1 // pred_region
      %3696 = dma.done [#allocation9], 32
    $region33: #{tpu_custom_call.1} parent=1 // pred_fallthru
      _
    %3697 = vsyncpa [#allocation3], 1
    %3698 = vsyncpa [#allocation6], 1
    %3699 = vsyncpa [#allocation4], 1
    %3700 = vsyncpa [#allocation9], 1

</llo_original>
